<compile_context>
chip_gen: v7x
topology: tpu7x:2x2x1
jax: 0.10.0
libtpu: 0.0.40
codegen_flags: <defaults>
</compile_context>

<pallas_src>
import numpy as np
import jax
import jax.numpy as jnp
from jax import lax
from jax.experimental import pallas as pl
from jax.experimental.pallas import tpu as pltpu

WIN_SIZE = 11
WIN_SIGMA = 1.5
K1, K2 = 0.01, 0.03
_HALO_ROWS = 16              # halo block height (multiple of 16, >= WIN_SIZE-1)


def _round_up(x, m):
    return ((x + m - 1) // m) * m


def _cdiv(a, b):
    return -(-a // b)


def _gauss_1d(size, sigma):
    coords = np.arange(size, dtype=np.float64) - size // 2
    g = np.exp(-(coords ** 2) / (2.0 * sigma ** 2))
    return g / g.sum()


def _build_bands(Hc, Wc, tile_hc, n_strips, tile_wc, n_wtiles, slab_w):
    """Per-strip / per-lane-tile banded filter matrices (bf16).

    Band rows (columns) belonging to out-of-range output rows (columns) are
    exactly zero, so the corresponding ssim_map entries evaluate to exactly
    (C1/C1)*(C2/C2) == 1.0 and are removed with a scalar correction in the
    wrapper instead of an in-kernel mask.
    """
    w = _gauss_1d(WIN_SIZE, WIN_SIGMA)
    ba = np.zeros((n_strips, tile_hc, tile_hc), np.float32)     # current-block taps
    bb = np.zeros((n_strips, tile_hc, _HALO_ROWS), np.float32)  # next-block (halo) taps
    for s in range(n_strips):
        for i in range(tile_hc):
            g = s * tile_hc + i
            if g >= Hc:
                continue                       # invalid output row -> zero band row
            for k in range(WIN_SIZE):
                r = i + k
                if r < tile_hc:
                    ba[s, i, r] = w[k]
                else:
                    bb[s, i, r - tile_hc] = w[k]
    bw = np.zeros((n_wtiles, slab_w, tile_wc), np.float32)
    for j in range(n_wtiles):
        for m in range(tile_wc):
            if j * tile_wc + m >= Wc:
                continue                       # invalid output col -> zero band col
            bw[j, m:m + WIN_SIZE, m] = w
    to_bf16 = lambda a: jnp.asarray(a, dtype=jnp.bfloat16)
    return to_bf16(ba), to_bf16(bb), to_bf16(bw)


def _make_kernel(C, tile_wc, slab_w, n_wtiles, c1, c2):
    bf16 = jnp.bfloat16
    f32 = jnp.float32

    def kernel(ba_ref, bb_ref, bw_ref, pc_ref, pn_ref, gc_ref, gn_ref, dc_ref,
               ssim_ref, l1_ref):
        p = pl.program_id(0)            # plane index = b*C + c

        ba = ba_ref[0]                  # (tile_hc, tile_hc)    bf16
        bb = bb_ref[0]                  # (tile_hc, 16)         bf16
        xc = pc_ref[0]                  # (tile_hc, W_pad)      f32
        xn = pn_ref[0]                  # (16, W_pad)           f32  (row halo)
        yc = gc_ref[0]
        yn = gn_ref[0]

        def hpass(qc, qn):
            # valid Gaussian conv along H: banded MXU matmuls, f32 accumulation
            return (jnp.dot(ba, qc.astype(bf16), preferred_element_type=f32)
                    + jnp.dot(bb, qn.astype(bf16), preferred_element_type=f32))

        t1 = hpass(xc, xn)
        t2 = hpass(yc, yn)
        t11 = hpass(xc * xc, xn * xn)
        t22 = hpass(yc * yc, yn * yn)
        t12 = hpass(xc * yc, xn * yn)

        ssim_sum = f32(0.0)
        for j in range(n_wtiles):       # static lane-tile loop: small live temps
            bwj = bw_ref[j]             # (slab_w, tile_wc) bf16
            lo = j * tile_wc            # lane-aligned slab start

            def wpass(t):
                return jnp.dot(t[:, lo:lo + slab_w].astype(bf16), bwj,
                               preferred_element_type=f32)

            mu1 = wpass(t1)
            mu2 = wpass(t2)
            e11 = wpass(t11)
            e22 = wpass(t22)
            e12 = wpass(t12)
            mu1mu2 = mu1 * mu2
            mu1sq = mu1 * mu1
            mu2sq = mu2 * mu2
            num = (2.0 * mu1mu2 + c1) * (2.0 * (e12 - mu1mu2) + c2)
            den = (mu1sq + mu2sq + c1) * ((e11 - mu1sq) + (e22 - mu2sq) + c2)
            # exact division (not approx reciprocal) so padded entries == 1.0
            ssim_sum = ssim_sum + jnp.sum(num / den)

        ssim_ref[...] = jnp.full(ssim_ref.shape, ssim_sum, dtype=f32)

        # L1 for batch-0 planes, per strip, reusing the gt strip already in
        # VMEM.  Padded rows/cols are zero in both dec and gt -> contribute 0.
        @pl.when(p < C)
        def _():
            l1_ref[...] = jnp.full(l1_ref.shape,
                                   jnp.sum(jnp.abs(dc_ref[0] - yc)), dtype=f32)

        @pl.when(p >= C)
        def _():
            l1_ref[...] = jnp.zeros_like(l1_ref)

    return kernel


def fused_ssim_l1(predicted_image, ground_truth_image, decouple_image,
                  data_range=1.0, tile_hc=None, tile_wc=None):
    """Returns (ssim_mean, l1_mean) computed in one fused, strip-tiled pallas_call."""
    B, C, H, W = predicted_image.shape
    assert H >= WIN_SIZE and W >= WIN_SIZE, "image smaller than SSIM window"
    Hc = H - WIN_SIZE + 1
    Wc = W - WIN_SIZE + 1

    # Row-strip tiling (output rows per grid step).  128 keeps the per-step
    # working set well under v7x's 64 MiB VMEM at ~1080p; 256+ is fine on v6e.
    if tile_hc is None:
        tile_hc = min(128, _round_up(Hc, _HALO_ROWS))
    tile_hc = max(_HALO_ROWS, _round_up(tile_hc, _HALO_ROWS))
    n_strips = _cdiv(Hc, tile_hc)
    # one extra row block so the 16-row halo fetch of the last strip is in range
    H_pad = (n_strips + 1) * tile_hc

    # Lane-tile width of the W-pass output (MXU N dim): 256 fills the 256-wide
    # MXU on v6e/v7x for large images, 128 for small ones.
    if tile_wc is None:
        tile_wc = 128 if Wc <= 128 else 256
    n_wtiles = _cdiv(Wc, tile_wc)
    slab_w = tile_wc if W <= tile_wc else tile_wc + 128
    W_pad = (n_wtiles - 1) * tile_wc + slab_w

    f32 = jnp.float32
    pred32 = predicted_image.astype(f32)
    gt32 = ground_truth_image.astype(f32)
    dec32 = decouple_image.astype(f32)

    pred_p = jnp.pad(pred32.reshape(B * C, H, W),
                     ((0, 0), (0, H_pad - H), (0, W_pad - W)))
    gt_p = jnp.pad(gt32.reshape(B * C, H, W),
                   ((0, 0), (0, H_pad - H), (0, W_pad - W)))
    dec_p = jnp.pad(dec32.reshape(C, H, W),
                    ((0, 0), (0, H_pad - H), (0, W_pad - W)))

    ba, bb, bw = _build_bands(Hc, Wc, tile_hc, n_strips, tile_wc, n_wtiles, slab_w)

    c1 = (K1 * data_range) ** 2
    c2 = (K2 * data_range) ** 2
    kernel = _make_kernel(C, tile_wc, slab_w, n_wtiles, c1, c2)

    hsub = tile_hc // _HALO_ROWS   # next-block halo offset in 16-row block units

    ssim_out, l1_out = pl.pallas_call(
        kernel,
        out_shape=(jax.ShapeDtypeStruct((B * C, n_strips, 8, 128), f32),
                   jax.ShapeDtypeStruct((B * C, n_strips, 8, 128), f32)),
        grid_spec=pltpu.PrefetchScalarGridSpec(
            num_scalar_prefetch=0,
            grid=(B * C, n_strips),
            in_specs=[
                pl.BlockSpec((1, tile_hc, tile_hc), lambda p, s: (s, 0, 0)),       # ba
                pl.BlockSpec((1, tile_hc, _HALO_ROWS), lambda p, s: (s, 0, 0)),    # bb
                pl.BlockSpec((n_wtiles, slab_w, tile_wc), lambda p, s: (0, 0, 0)), # bw
                pl.BlockSpec((1, tile_hc, W_pad), lambda p, s: (p, s, 0)),         # pred strip
                pl.BlockSpec((1, _HALO_ROWS, W_pad),
                             lambda p, s: (p, (s + 1) * hsub, 0)),                 # pred halo
                pl.BlockSpec((1, tile_hc, W_pad), lambda p, s: (p, s, 0)),         # gt strip
                pl.BlockSpec((1, _HALO_ROWS, W_pad),
                             lambda p, s: (p, (s + 1) * hsub, 0)),                 # gt halo
                pl.BlockSpec((1, tile_hc, W_pad), lambda p, s: (p % C, s, 0)),     # dec strip
            ],
            out_specs=[
                pl.BlockSpec((1, 1, 8, 128), lambda p, s: (p, s, 0, 0)),  # ssim partial
                pl.BlockSpec((1, 1, 8, 128), lambda p, s: (p, s, 0, 0)),  # l1 partial
            ]),
        compiler_params=pltpu.CompilerParams(
            dimension_semantics=("parallel", "parallel"),
            vmem_limit_bytes=48 * 1024 * 1024),
    )(ba, bb, bw, pred_p, pred_p, gt_p, gt_p, dec_p)

    # Padded output rows/columns contribute exactly 1.0 each (zero band rows /
    # columns -> mu = sigma = 0 -> (C1/C1)*(C2/C2) == 1.0): remove them with a
    # scalar correction instead of a per-element mask.
    pad_entries = B * C * (n_strips * tile_hc * n_wtiles * tile_wc - Hc * Wc)
    ssim_mean = (jnp.sum(ssim_out[:, :, 0, 0]) - pad_entries) / (B * C * Hc * Wc)

    l1_sum = jnp.sum(l1_out[:C, :, 0, 0])
    covered = n_strips * tile_hc
    if covered < H:   # up to WIN_SIZE-1 bottom rows not covered by the strips
        l1_sum = l1_sum + jnp.sum(jnp.abs(dec32[:, covered:, :]
                                          - gt32[0, :, covered:, :]))
    l1_mean = l1_sum / (C * H * W)
    return ssim_mean, l1_mean


class LossFunction:
    def __init__(self, lambda_value=0.2, enable_regularization=True,
                 regularization_weight=2.0):
        self.lambda_value = lambda_value
        self.enable_regularization = enable_regularization
        self.regularization_weight = regularization_weight
        self.iteration = 0

    def __call__(self, iteration, decouple_image, predicted_image,
                 ground_truth_image, point_invalid_mask=None,
                 pointcloud_features=None):
        self.iteration = iteration
        if predicted_image.ndim == 3:
            predicted_image = predicted_image[None]
        if ground_truth_image.ndim == 3:
            ground_truth_image = ground_truth_image[None]

        # TODO(synk): original returns nn.Parameter(torch.empty(1)) (uninitialized
        # memory); deterministically init to zeros here.
        mask_loss = jnp.zeros((1,), jnp.float32)

        ssim_val, L1 = fused_ssim_l1(predicted_image, ground_truth_image,
                                     decouple_image, data_range=1.0)
        LD_SSIM = 1.0 - ssim_val

        # exact reproduction of the (precedence-quirky) PyTorch expression:
        # iteration - 3000/30000 == iteration - 0.1  (iteration must be a Python scalar)
        lambda_l = (min(max(iteration - 3000 / 30000, 0), 1)
                    * (0.2 - self.lambda_value) + self.lambda_value)
        L = (1.0 - lambda_l) * L1 + lambda_l * LD_SSIM
        return (L, L1, LD_SSIM, mask_loss)


# ---------------------------------------------------------------------------
# pure-JAX references for a sanity check (shifted-slice separable filter, f32)
# ---------------------------------------------------------------------------
def _ssim_reference(pred, gt, data_range=1.0):
    w = jnp.asarray(_gauss_1d(WIN_SIZE, WIN_SIGMA), jnp.float32)
    B, C, H, W = pred.shape
    Hc, Wc = H - WIN_SIZE + 1, W - WIN_SIZE + 1

    def gfilter(img):
        t = sum(w[k] * img[:, :, k:k + Hc, :] for k in range(WIN_SIZE))
        return sum(w[k] * t[:, :, :, k:k + Wc] for k in range(WIN_SIZE))

    C1 = (K1 * data_range) ** 2
    C2 = (K2 * data_range) ** 2
    x = pred.astype(jnp.float32)
    y = gt.astype(jnp.float32)
    mu1, mu2 = gfilter(x), gfilter(y)
    s11 = gfilter(x * x) - mu1 * mu1
    s22 = gfilter(y * y) - mu2 * mu2
    s12 = gfilter(x * y) - mu1 * mu2
    cs = (2 * s12 + C2) / (s11 + s22 + C2)
    sm = ((2 * mu1 * mu2 + C1) / (mu1 * mu1 + mu2 * mu2 + C1)) * cs
    return jnp.mean(sm)


if __name__ == "__main__":
    key = jax.random.PRNGKey(0)
    k1, k2, k3 = jax.random.split(key, 3)

    B, C, H, W = 2, 3, 32, 32
    predicted_image = jax.random.uniform(k1, (B, C, H, W), jnp.float32)
    ground_truth_image = jax.random.uniform(k2, (B, C, H, W), jnp.float32)
    decouple_image = jax.random.uniform(k3, (C, H, W), jnp.float32)

    loss_fn = LossFunction(lambda_value=0.2, enable_regularization=True,
                           regularization_weight=2.0)
    L, L1, LD_SSIM, mask_loss = loss_fn(
        iteration=100,
        decouple_image=decouple_image,
        predicted_image=predicted_image,
        ground_truth_image=ground_truth_image,
    )
    jax.block_until_ready((L, L1, LD_SSIM, mask_loss))

    # sanity check against pure-JAX f32 references
    # (1e-2 tolerance: the kernel uses bf16 matmul operands with f32 accumulation)
    ref_ld_ssim = 1.0 - _ssim_reference(predicted_image, ground_truth_image)
    ref_l1 = jnp.mean(jnp.abs(decouple_image - ground_truth_image[0]))
    assert abs(float(LD_SSIM) - float(ref_ld_ssim)) < 1e-2, (LD_SSIM, ref_ld_ssim)
    assert abs(float(L1) - float(ref_l1)) < 1e-4, (L1, ref_l1)

    print("KERNEL_OK")
</pallas_src>

<mosaic_0001>
module attributes {stable_mosaic.version = 11 : i64} {
  func.func @kernel(%arg0: i32, %arg1: i32, %arg2: memref<1x32x32xbf16, #tpu.memory_space<vmem>>, %arg3: memref<1x32x16xbf16, #tpu.memory_space<vmem>>, %arg4: memref<1x128x128xbf16, #tpu.memory_space<vmem>>, %arg5: memref<1x32x128xf32, #tpu.memory_space<vmem>>, %arg6: memref<1x16x128xf32, #tpu.memory_space<vmem>>, %arg7: memref<1x32x128xf32, #tpu.memory_space<vmem>>, %arg8: memref<1x16x128xf32, #tpu.memory_space<vmem>>, %arg9: memref<1x32x128xf32, #tpu.memory_space<vmem>>, %arg10: memref<1x1x8x128xf32, #tpu.memory_space<vmem>>, %arg11: memref<1x1x8x128xf32, #tpu.memory_space<vmem>>) attributes {dimension_semantics = [#tpu.dimension_semantics<parallel>, #tpu.dimension_semantics<parallel>], iteration_bounds = array<i64: 6, 1>, scalar_prefetch = 0 : i64, scratch_operands = 0 : i64, tpu.core_type = #tpu.core_type<tc>, window_params = [{transform_indices = @transform_0, window_bounds = array<i64: 1, 32, 32>}, {transform_indices = @transform_1, window_bounds = array<i64: 1, 32, 16>}, {pipeline_mode = #tpu.pipeline_mode<synchronous>, transform_indices = @transform_2, window_bounds = array<i64: 1, 128, 128>}, {transform_indices = @transform_3, window_bounds = array<i64: 1, 32, 128>}, {transform_indices = @transform_4, window_bounds = array<i64: 1, 16, 128>}, {transform_indices = @transform_5, window_bounds = array<i64: 1, 32, 128>}, {transform_indices = @transform_6, window_bounds = array<i64: 1, 16, 128>}, {transform_indices = @transform_7, window_bounds = array<i64: 1, 32, 128>}, {transform_indices = @transform_8, window_bounds = array<i64: 1, 1, 8, 128>}, {transform_indices = @transform_9, window_bounds = array<i64: 1, 1, 8, 128>}]} {
    %c0 = arith.constant 0 : index
    %c0_0 = arith.constant 0 : index
    %c0_1 = arith.constant 0 : index
    %0 = vector.load %arg2[%c0, %c0_0, %c0_1] : memref<1x32x32xbf16, #tpu.memory_space<vmem>>, vector<1x32x32xbf16>
    %1 = vector.shape_cast %0 : vector<1x32x32xbf16> to vector<32x32xbf16>
    %c0_2 = arith.constant 0 : index
    %c0_3 = arith.constant 0 : index
    %c0_4 = arith.constant 0 : index
    %2 = vector.load %arg3[%c0_2, %c0_3, %c0_4] : memref<1x32x16xbf16, #tpu.memory_space<vmem>>, vector<1x32x16xbf16>
    %3 = vector.shape_cast %2 : vector<1x32x16xbf16> to vector<32x16xbf16>
    %c0_5 = arith.constant 0 : index
    %c0_6 = arith.constant 0 : index
    %c0_7 = arith.constant 0 : index
    %4 = vector.load %arg5[%c0_5, %c0_6, %c0_7] : memref<1x32x128xf32, #tpu.memory_space<vmem>>, vector<1x32x128xf32>
    %5 = vector.shape_cast %4 : vector<1x32x128xf32> to vector<32x128xf32>
    %c0_8 = arith.constant 0 : index
    %c0_9 = arith.constant 0 : index
    %c0_10 = arith.constant 0 : index
    %6 = vector.load %arg6[%c0_8, %c0_9, %c0_10] : memref<1x16x128xf32, #tpu.memory_space<vmem>>, vector<1x16x128xf32>
    %7 = vector.shape_cast %6 : vector<1x16x128xf32> to vector<16x128xf32>
    %c0_11 = arith.constant 0 : index
    %c0_12 = arith.constant 0 : index
    %c0_13 = arith.constant 0 : index
    %8 = vector.load %arg7[%c0_11, %c0_12, %c0_13] : memref<1x32x128xf32, #tpu.memory_space<vmem>>, vector<1x32x128xf32>
    %9 = vector.shape_cast %8 : vector<1x32x128xf32> to vector<32x128xf32>
    %c0_14 = arith.constant 0 : index
    %c0_15 = arith.constant 0 : index
    %c0_16 = arith.constant 0 : index
    %10 = vector.load %arg8[%c0_14, %c0_15, %c0_16] : memref<1x16x128xf32, #tpu.memory_space<vmem>>, vector<1x16x128xf32>
    %11 = vector.shape_cast %10 : vector<1x16x128xf32> to vector<16x128xf32>
    %12 = arith.truncf %5 : vector<32x128xf32> to vector<32x128xbf16>
    %cst = arith.constant dense<0.000000e+00> : vector<32x128xf32>
    %13 = tpu.matmul %1, %12, %cst {dimension_numbers = #tpu.dot_dimension_numbers<[1], [0], [0], [1], [0, 0, 1, 1], [], []>} : vector<32x32xbf16>, vector<32x128xbf16>, vector<32x128xf32> -> vector<32x128xf32>
    %14 = arith.truncf %7 : vector<16x128xf32> to vector<16x128xbf16>
    %cst_17 = arith.constant dense<0.000000e+00> : vector<32x128xf32>
    %15 = tpu.matmul %3, %14, %cst_17 {dimension_numbers = #tpu.dot_dimension_numbers<[1], [0], [0], [1], [0, 0, 1, 1], [], []>} : vector<32x16xbf16>, vector<16x128xbf16>, vector<32x128xf32> -> vector<32x128xf32>
    %16 = arith.addf %13, %15 : vector<32x128xf32>
    %17 = arith.truncf %9 : vector<32x128xf32> to vector<32x128xbf16>
    %cst_18 = arith.constant dense<0.000000e+00> : vector<32x128xf32>
    %18 = tpu.matmul %1, %17, %cst_18 {dimension_numbers = #tpu.dot_dimension_numbers<[1], [0], [0], [1], [0, 0, 1, 1], [], []>} : vector<32x32xbf16>, vector<32x128xbf16>, vector<32x128xf32> -> vector<32x128xf32>
    %19 = arith.truncf %11 : vector<16x128xf32> to vector<16x128xbf16>
    %cst_19 = arith.constant dense<0.000000e+00> : vector<32x128xf32>
    %20 = tpu.matmul %3, %19, %cst_19 {dimension_numbers = #tpu.dot_dimension_numbers<[1], [0], [0], [1], [0, 0, 1, 1], [], []>} : vector<32x16xbf16>, vector<16x128xbf16>, vector<32x128xf32> -> vector<32x128xf32>
    %21 = arith.addf %18, %20 : vector<32x128xf32>
    %22 = arith.mulf %5, %5 : vector<32x128xf32>
    %23 = arith.mulf %7, %7 : vector<16x128xf32>
    %24 = arith.truncf %22 : vector<32x128xf32> to vector<32x128xbf16>
    %cst_20 = arith.constant dense<0.000000e+00> : vector<32x128xf32>
    %25 = tpu.matmul %1, %24, %cst_20 {dimension_numbers = #tpu.dot_dimension_numbers<[1], [0], [0], [1], [0, 0, 1, 1], [], []>} : vector<32x32xbf16>, vector<32x128xbf16>, vector<32x128xf32> -> vector<32x128xf32>
    %26 = arith.truncf %23 : vector<16x128xf32> to vector<16x128xbf16>
    %cst_21 = arith.constant dense<0.000000e+00> : vector<32x128xf32>
    %27 = tpu.matmul %3, %26, %cst_21 {dimension_numbers = #tpu.dot_dimension_numbers<[1], [0], [0], [1], [0, 0, 1, 1], [], []>} : vector<32x16xbf16>, vector<16x128xbf16>, vector<32x128xf32> -> vector<32x128xf32>
    %28 = arith.addf %25, %27 : vector<32x128xf32>
    %29 = arith.mulf %9, %9 : vector<32x128xf32>
    %30 = arith.mulf %11, %11 : vector<16x128xf32>
    %31 = arith.truncf %29 : vector<32x128xf32> to vector<32x128xbf16>
    %cst_22 = arith.constant dense<0.000000e+00> : vector<32x128xf32>
    %32 = tpu.matmul %1, %31, %cst_22 {dimension_numbers = #tpu.dot_dimension_numbers<[1], [0], [0], [1], [0, 0, 1, 1], [], []>} : vector<32x32xbf16>, vector<32x128xbf16>, vector<32x128xf32> -> vector<32x128xf32>
    %33 = arith.truncf %30 : vector<16x128xf32> to vector<16x128xbf16>
    %cst_23 = arith.constant dense<0.000000e+00> : vector<32x128xf32>
    %34 = tpu.matmul %3, %33, %cst_23 {dimension_numbers = #tpu.dot_dimension_numbers<[1], [0], [0], [1], [0, 0, 1, 1], [], []>} : vector<32x16xbf16>, vector<16x128xbf16>, vector<32x128xf32> -> vector<32x128xf32>
    %35 = arith.addf %32, %34 : vector<32x128xf32>
    %36 = arith.mulf %5, %9 : vector<32x128xf32>
    %37 = arith.mulf %7, %11 : vector<16x128xf32>
    %38 = arith.truncf %36 : vector<32x128xf32> to vector<32x128xbf16>
    %cst_24 = arith.constant dense<0.000000e+00> : vector<32x128xf32>
    %39 = tpu.matmul %1, %38, %cst_24 {dimension_numbers = #tpu.dot_dimension_numbers<[1], [0], [0], [1], [0, 0, 1, 1], [], []>} : vector<32x32xbf16>, vector<32x128xbf16>, vector<32x128xf32> -> vector<32x128xf32>
    %40 = arith.truncf %37 : vector<16x128xf32> to vector<16x128xbf16>
    %cst_25 = arith.constant dense<0.000000e+00> : vector<32x128xf32>
    %41 = tpu.matmul %3, %40, %cst_25 {dimension_numbers = #tpu.dot_dimension_numbers<[1], [0], [0], [1], [0, 0, 1, 1], [], []>} : vector<32x16xbf16>, vector<16x128xbf16>, vector<32x128xf32> -> vector<32x128xf32>
    %42 = arith.addf %39, %41 : vector<32x128xf32>
    %c0_26 = arith.constant 0 : index
    %c0_27 = arith.constant 0 : index
    %c0_28 = arith.constant 0 : index
    %43 = vector.load %arg4[%c0_26, %c0_27, %c0_28] : memref<1x128x128xbf16, #tpu.memory_space<vmem>>, vector<1x128x128xbf16>
    %44 = vector.shape_cast %43 : vector<1x128x128xbf16> to vector<128x128xbf16>
    %45 = arith.truncf %16 : vector<32x128xf32> to vector<32x128xbf16>
    %cst_29 = arith.constant dense<0.000000e+00> : vector<32x128xf32>
    %46 = tpu.matmul %45, %44, %cst_29 {dimension_numbers = #tpu.dot_dimension_numbers<[1], [0], [0], [1], [0, 0, 1, 1], [], []>} : vector<32x128xbf16>, vector<128x128xbf16>, vector<32x128xf32> -> vector<32x128xf32>
    %47 = arith.truncf %21 : vector<32x128xf32> to vector<32x128xbf16>
    %cst_30 = arith.constant dense<0.000000e+00> : vector<32x128xf32>
    %48 = tpu.matmul %47, %44, %cst_30 {dimension_numbers = #tpu.dot_dimension_numbers<[1], [0], [0], [1], [0, 0, 1, 1], [], []>} : vector<32x128xbf16>, vector<128x128xbf16>, vector<32x128xf32> -> vector<32x128xf32>
    %49 = arith.truncf %28 : vector<32x128xf32> to vector<32x128xbf16>
    %cst_31 = arith.constant dense<0.000000e+00> : vector<32x128xf32>
    %50 = tpu.matmul %49, %44, %cst_31 {dimension_numbers = #tpu.dot_dimension_numbers<[1], [0], [0], [1], [0, 0, 1, 1], [], []>} : vector<32x128xbf16>, vector<128x128xbf16>, vector<32x128xf32> -> vector<32x128xf32>
    %51 = arith.truncf %35 : vector<32x128xf32> to vector<32x128xbf16>
    %cst_32 = arith.constant dense<0.000000e+00> : vector<32x128xf32>
    %52 = tpu.matmul %51, %44, %cst_32 {dimension_numbers = #tpu.dot_dimension_numbers<[1], [0], [0], [1], [0, 0, 1, 1], [], []>} : vector<32x128xbf16>, vector<128x128xbf16>, vector<32x128xf32> -> vector<32x128xf32>
    %53 = arith.truncf %42 : vector<32x128xf32> to vector<32x128xbf16>
    %cst_33 = arith.constant dense<0.000000e+00> : vector<32x128xf32>
    %54 = tpu.matmul %53, %44, %cst_33 {dimension_numbers = #tpu.dot_dimension_numbers<[1], [0], [0], [1], [0, 0, 1, 1], [], []>} : vector<32x128xbf16>, vector<128x128xbf16>, vector<32x128xf32> -> vector<32x128xf32>
    %55 = arith.mulf %46, %48 : vector<32x128xf32>
    %56 = arith.mulf %46, %46 : vector<32x128xf32>
    %57 = arith.mulf %48, %48 : vector<32x128xf32>
    %cst_34 = arith.constant 2.000000e+00 : f32
    %58 = vector.broadcast %cst_34 : f32 to vector<32x128xf32>
    %59 = arith.mulf %58, %55 : vector<32x128xf32>
    %cst_35 = arith.constant 9.99999974E-5 : f32
    %60 = vector.broadcast %cst_35 : f32 to vector<32x128xf32>
    %61 = arith.addf %59, %60 : vector<32x128xf32>
    %62 = arith.subf %54, %55 : vector<32x128xf32>
    %cst_36 = arith.constant 2.000000e+00 : f32
    %63 = vector.broadcast %cst_36 : f32 to vector<32x128xf32>
    %64 = arith.mulf %63, %62 : vector<32x128xf32>
    %cst_37 = arith.constant 8.99999984E-4 : f32
    %65 = vector.broadcast %cst_37 : f32 to vector<32x128xf32>
    %66 = arith.addf %64, %65 : vector<32x128xf32>
    %67 = arith.mulf %61, %66 : vector<32x128xf32>
    %68 = arith.addf %56, %57 : vector<32x128xf32>
    %cst_38 = arith.constant 9.99999974E-5 : f32
    %69 = vector.broadcast %cst_38 : f32 to vector<32x128xf32>
    %70 = arith.addf %68, %69 : vector<32x128xf32>
    %71 = arith.subf %50, %56 : vector<32x128xf32>
    %72 = arith.subf %52, %57 : vector<32x128xf32>
    %73 = arith.addf %71, %72 : vector<32x128xf32>
    %cst_39 = arith.constant 8.99999984E-4 : f32
    %74 = vector.broadcast %cst_39 : f32 to vector<32x128xf32>
    %75 = arith.addf %73, %74 : vector<32x128xf32>
    %76 = arith.mulf %70, %75 : vector<32x128xf32>
    %77 = arith.divf %67, %76 : vector<32x128xf32>
    %78 = vector.shape_cast %77 : vector<32x128xf32> to vector<1x32x128xf32>
    %cst_40 = arith.constant dense<0.000000e+00> : vector<1xf32>
    %79 = vector.multi_reduction <add>, %78, %cst_40 [1, 2] : vector<1x32x128xf32> to vector<1xf32>
    %80 = vector.shape_cast %79 : vector<1xf32> to vector<1x1x1xf32>
    %81 = vector.extract %80[0, 0, 0] : f32 from vector<1x1x1xf32>
    %cst_41 = arith.constant 0.000000e+00 : f32
    %82 = arith.addf %cst_41, %81 : f32
    %83 = vector.broadcast %82 : f32 to vector<1x1x8x128xf32>
    %c0_42 = arith.constant 0 : index
    %c0_43 = arith.constant 0 : index
    %c0_44 = arith.constant 0 : index
    %c0_45 = arith.constant 0 : index
    %84 = vector.load %arg10[%c0_42, %c0_43, %c0_44, %c0_45] : memref<1x1x8x128xf32, #tpu.memory_space<vmem>>, vector<1x1x8x128xf32>
    tpu.vector_store %arg10[%c0_42, %c0_43, %c0_44, %c0_45], %83 {strides = array<i32>} : memref<1x1x8x128xf32, #tpu.memory_space<vmem>>, vector<1x1x8x128xf32>,
    %c3_i32 = arith.constant 3 : i32
    %85 = arith.cmpi slt, %arg0, %c3_i32 : i32
    %86 = arith.extui %85 : i1 to i32
    %c0_i32 = arith.constant 0 : i32
    %87 = arith.cmpi ne, %86, %c0_i32 : i32
    scf.if %87 {
      %c0_48 = arith.constant 0 : index
      %c0_49 = arith.constant 0 : index
      %c0_50 = arith.constant 0 : index
      %91 = vector.load %arg9[%c0_48, %c0_49, %c0_50] : memref<1x32x128xf32, #tpu.memory_space<vmem>>, vector<1x32x128xf32>
      %92 = vector.shape_cast %91 : vector<1x32x128xf32> to vector<32x128xf32>
      %93 = arith.subf %92, %9 : vector<32x128xf32>
      %94 = math.absf %93 : vector<32x128xf32>
      %95 = vector.shape_cast %94 : vector<32x128xf32> to vector<1x32x128xf32>
      %cst_51 = arith.constant dense<0.000000e+00> : vector<1xf32>
      %96 = vector.multi_reduction <add>, %95, %cst_51 [1, 2] : vector<1x32x128xf32> to vector<1xf32>
      %97 = vector.shape_cast %96 : vector<1xf32> to vector<1x1x1xf32>
      %98 = vector.extract %97[0, 0, 0] : f32 from vector<1x1x1xf32>
      %99 = vector.broadcast %98 : f32 to vector<1x1x8x128xf32>
      %c0_52 = arith.constant 0 : index
      %c0_53 = arith.constant 0 : index
      %c0_54 = arith.constant 0 : index
      %c0_55 = arith.constant 0 : index
      %100 = vector.load %arg11[%c0_52, %c0_53, %c0_54, %c0_55] : memref<1x1x8x128xf32, #tpu.memory_space<vmem>>, vector<1x1x8x128xf32>
      tpu.vector_store %arg11[%c0_52, %c0_53, %c0_54, %c0_55], %99 {strides = array<i32>} : memref<1x1x8x128xf32, #tpu.memory_space<vmem>>, vector<1x1x8x128xf32>,
    } else {
    }
    %c3_i32_46 = arith.constant 3 : i32
    %88 = arith.cmpi sge, %arg0, %c3_i32_46 : i32
    %89 = arith.extui %88 : i1 to i32
    %c0_i32_47 = arith.constant 0 : i32
    %90 = arith.cmpi ne, %89, %c0_i32_47 : i32
    scf.if %90 {
      %cst_48 = arith.constant 0.000000e+00 : f32
      %91 = vector.broadcast %cst_48 : f32 to vector<1x1x8x128xf32>
      %c0_49 = arith.constant 0 : index
      %c0_50 = arith.constant 0 : index
      %c0_51 = arith.constant 0 : index
      %c0_52 = arith.constant 0 : index
      %92 = vector.load %arg11[%c0_49, %c0_50, %c0_51, %c0_52] : memref<1x1x8x128xf32, #tpu.memory_space<vmem>>, vector<1x1x8x128xf32>
      tpu.vector_store %arg11[%c0_49, %c0_50, %c0_51, %c0_52], %91 {strides = array<i32>} : memref<1x1x8x128xf32, #tpu.memory_space<vmem>>, vector<1x1x8x128xf32>,
    } else {
    }
    return
  }
  func.func @transform_0(%arg0: i32, %arg1: i32) -> (i32, i32, i32) {
    %c0_i32 = arith.constant 0 : i32
    %c0_i32_0 = arith.constant 0 : i32
    %c0_i32_1 = arith.constant 0 : i32
    return %arg1, %c0_i32, %c0_i32_0 : i32, i32, i32
  }
  func.func @transform_1(%arg0: i32, %arg1: i32) -> (i32, i32, i32) {
    %c0_i32 = arith.constant 0 : i32
    %c0_i32_0 = arith.constant 0 : i32
    %c0_i32_1 = arith.constant 0 : i32
    return %arg1, %c0_i32, %c0_i32_0 : i32, i32, i32
  }
  func.func @transform_2(%arg0: i32, %arg1: i32) -> (i32, i32, i32) {
    %c0_i32 = arith.constant 0 : i32
    %c0_i32_0 = arith.constant 0 : i32
    %c0_i32_1 = arith.constant 0 : i32
    %c0_i32_2 = arith.constant 0 : i32
    return %c0_i32, %c0_i32_0, %c0_i32_1 : i32, i32, i32
  }
  func.func @transform_3(%arg0: i32, %arg1: i32) -> (i32, i32, i32) {
    %c0_i32 = arith.constant 0 : i32
    %c0_i32_0 = arith.constant 0 : i32
    return %arg0, %arg1, %c0_i32 : i32, i32, i32
  }
  func.func @transform_4(%arg0: i32, %arg1: i32) -> (i32, i32, i32) {
    %c1_i32 = arith.constant 1 : i32
    %0 = arith.addi %arg1, %c1_i32 : i32
    %c2_i32 = arith.constant 2 : i32
    %1 = arith.muli %0, %c2_i32 : i32
    %c0_i32 = arith.constant 0 : i32
    %c0_i32_0 = arith.constant 0 : i32
    return %arg0, %1, %c0_i32 : i32, i32, i32
  }
  func.func @transform_5(%arg0: i32, %arg1: i32) -> (i32, i32, i32) {
    %c0_i32 = arith.constant 0 : i32
    %c0_i32_0 = arith.constant 0 : i32
    return %arg0, %arg1, %c0_i32 : i32, i32, i32
  }
  func.func @transform_6(%arg0: i32, %arg1: i32) -> (i32, i32, i32) {
    %c1_i32 = arith.constant 1 : i32
    %0 = arith.addi %arg1, %c1_i32 : i32
    %c2_i32 = arith.constant 2 : i32
    %1 = arith.muli %0, %c2_i32 : i32
    %c0_i32 = arith.constant 0 : i32
    %c0_i32_0 = arith.constant 0 : i32
    return %arg0, %1, %c0_i32 : i32, i32, i32
  }
  func.func @transform_7(%arg0: i32, %arg1: i32) -> (i32, i32, i32) {
    %c3_i32 = arith.constant 3 : i32
    %c0_i32 = arith.constant 0 : i32
    %0 = arith.cmpi eq, %c3_i32, %c0_i32 : i32
    %c1_i32 = arith.constant 1 : i32
    %1 = arith.select %0, %c1_i32, %c3_i32 : i32
    %2 = arith.remsi %arg0, %1 : i32
    %c0_i32_0 = arith.constant 0 : i32
    %3 = arith.cmpi ne, %2, %c0_i32_0 : i32
    %c0_i32_1 = arith.constant 0 : i32
    %4 = arith.cmpi slt, %2, %c0_i32_1 : i32
    %c0_i32_2 = arith.constant 0 : i32
    %5 = arith.cmpi slt, %1, %c0_i32_2 : i32
    %6 = arith.xori %4, %5 : i1
    %7 = arith.andi %6, %3 : i1
    %8 = arith.addi %2, %1 : i32
    %9 = arith.select %7, %8, %2 : i32
    %c0_i32_3 = arith.constant 0 : i32
    %c0_i32_4 = arith.constant 0 : i32
    return %9, %arg1, %c0_i32_3 : i32, i32, i32
  }
  func.func @transform_8(%arg0: i32, %arg1: i32) -> (i32, i32, i32, i32) {
    %c0_i32 = arith.constant 0 : i32
    %c0_i32_0 = arith.constant 0 : i32
    %c0_i32_1 = arith.constant 0 : i32
    return %arg0, %arg1, %c0_i32, %c0_i32_0 : i32, i32, i32, i32
  }
  func.func @transform_9(%arg0: i32, %arg1: i32) -> (i32, i32, i32, i32) {
    %c0_i32 = arith.constant 0 : i32
    %c0_i32_0 = arith.constant 0 : i32
    %c0_i32_1 = arith.constant 0 : i32
    return %arg0, %arg1, %c0_i32, %c0_i32_0 : i32, i32, i32, i32
  }
}

</mosaic_0001>

<llo_original>
// kernel: tpu_custom_call.1
$region0: #{tpu_custom_call.1}
  #allocation0 [shape = 'u32[]', space=smem, size = 0x4, offset = 0x4, fixed_abs, tag = 'smem constant byte address 0x4 - core index']
  #allocation1 [shape = 'u32[144,128]{1,0:T(1,128)}', space=vmem, size = 0x12000, scoped, tag = 'internal scratch']
  %s0 = inlined_call_operand.vmem [shape: bf16[1,32,32], index: 0, kind: input, shape index: {}]
  %s1 = inlined_call_operand.vmem [shape: bf16[1,32,16], index: 1, kind: input, shape index: {}]
  %s2 = inlined_call_operand.hbm [shape: bf16[1,128,128], index: 2, kind: input, shape index: {}]
  %s3 = inlined_call_operand.hbm [shape: f32[6,64,128], index: 3, kind: input, shape index: {}]
  %s4 = inlined_call_operand.hbm [shape: f32[6,64,128], index: 4, kind: input, shape index: {}]
  %s5 = inlined_call_operand.hbm [shape: f32[6,64,128], index: 5, kind: input, shape index: {}]
  %s6 = inlined_call_operand.hbm [shape: f32[6,64,128], index: 6, kind: input, shape index: {}]
  %s7 = inlined_call_operand.hbm [shape: f32[3,64,128], index: 7, kind: input, shape index: {}]
  %s8 = inlined_call_operand.hbm [shape: f32[6,1,8,128], index: 8, kind: output, shape index: {0}]
  %s9 = inlined_call_operand.hbm [shape: f32[6,1,8,128], index: 9, kind: output, shape index: {1}]
  %10 = xla_tuple %s8, %s9
  %s11 = sld [smem:[#allocation0]]
  $region105: #{tpu_custom_call.1} parent=0
    _
  %s13 = ssub.s32 1, %s11
  %s14 = scalar_select 0, %s13, %s11
  $region1: #{tpu_custom_call.1} parent=0
    #allocation2 [shape = 'u8[32768]{0}', space=vmem, size = 0x8000, scoped, tag = 'input window, operand 2, single buffered']
    #allocation3 [shape = 's32[2]{0}', space=sflag, size = 0x8, scoped, tag = 'scoped memory for tpu_custom_call.1']
    #allocation4 [shape = 's32[2]{0}', space=sflag, size = 0x8, scoped, tag = 'scoped memory for tpu_custom_call.1']
    #allocation5 [shape = 'u8[32768]{0}', space=vmem, size = 0x8000, scoped, tag = 'input window, operand 3']
    #allocation6 [shape = 's32[2]{0}', space=sflag, size = 0x8, scoped, tag = 'scoped memory for tpu_custom_call.1']
    #allocation7 [shape = 'u8[16384]{0}', space=vmem, size = 0x4000, scoped, tag = 'input window, operand 4']
    #allocation8 [shape = 'u8[32768]{0}', space=vmem, size = 0x8000, scoped, tag = 'input window, operand 5']
    #allocation9 [shape = 's32[2]{0}', space=sflag, size = 0x8, scoped, tag = 'scoped memory for tpu_custom_call.1']
    #allocation10 [shape = 'u8[16384]{0}', space=vmem, size = 0x4000, scoped, tag = 'input window, operand 6']
    #allocation11 [shape = 'u8[32768]{0}', space=vmem, size = 0x8000, scoped, tag = 'input window, operand 7']
    #allocation12 [shape = 's32[2]{0}', space=sflag, size = 0x8, scoped, tag = 'scoped memory for tpu_custom_call.1']
    #allocation13 [shape = 'u8[8192]{0}', space=vmem, size = 0x2000, scoped, tag = 'output window, operand 0']
    #allocation14 [shape = 'u8[8192]{0}', space=vmem, size = 0x2000, scoped, tag = 'output window, operand 1']
    #allocation15 [shape = 's32[2]{0}', space=sflag, size = 0x8, scoped, tag = 'scoped memory for tpu_custom_call.1']
    %15 = vsyncpa [#allocation3], 0
    %16 = vsyncpa [#allocation6], 0
    %s17 = scalar_lea.sflag [#allocation6], 1
    %18 = vsyncpa %s17, 0
    %19 = vsyncpa [#allocation9], 0
    %s20 = scalar_lea.sflag [#allocation9], 1
    %21 = vsyncpa %s20, 0
    %22 = vsyncpa [#allocation12], 0
    %s23 = scalar_lea.sflag [#allocation12], 1
    %24 = vsyncpa %s23, 0
    %25 = vsyncpa [#allocation4], 0
    %s26 = scalar_lea.sflag [#allocation4], 1
    %27 = vsyncpa %s26, 0
    %28 = vsyncpa [#allocation15], 0
    %s29 = scalar_lea.sflag [#allocation15], 1
    %30 = vsyncpa %s29, 0
    loop: start=0, step=1, limit=8
    $region2: #{tpu_custom_call.1} parent=1 // loop_pre_header
      _
    $region3: #{tpu_custom_call.1} parent=1 // loop_header
      %s32 = sphi 0, %s36
      %p33 = scmp.ge.s32.totalorder %s32, 8
      %s39 = sphi 0, %s51
      %s40 = sphi 0, %s47
      %s41 = sphi 0, %s39
      %s42 = sphi 0, %s40
      %s43 = sphi 0, %s41
      %s44 = sphi 0, %s42
      %s54 = sphi 0, %s56
      %s57 = sphi 0, %s54
      %s58 = sphi 0, %s57
      %s74 = sphi 0, %s58
      %s80 = sphi 0, %s82
      %s83 = sphi 0, %s80
      %s84 = sphi 0, %s83
      %s100 = sphi 0, %s84
      %s104 = sphi 0, %s104
      %s106 = sphi 0, %s104
      %s107 = sphi 0, %s106
      %s121 = sphi 0, %s107
      %s129 = sphi 0, %s131
      %s132 = sphi 0, %s129
      %s133 = sphi 0, %s132
      %s149 = sphi 0, %s133
      %s161 = sphi 0, %s163
      %s164 = sphi 0, %s161
      %s165 = sphi 0, %s164
      %s181 = sphi 0, %s165
      %s189 = sphi 0, %s191
      %s192 = sphi 0, %s189
      %s193 = sphi 0, %s192
      %s209 = sphi 0, %s193
      %s221 = sphi 0, %s223
      %s224 = sphi 0, %s221
      %s225 = sphi 0, %s224
      %s241 = sphi 0, %s225
      %s275 = sphi 0, %s277
      %s278 = sphi 0, %s275
      %s279 = sphi 0, %s278
      %s295 = sphi 0, %s279
      %s303 = sphi 0, %s305
      %s306 = sphi 0, %s303
      %s307 = sphi 0, %s306
      %s323 = sphi 0, %s307
      %s331 = sphi 0, %s333
      %s334 = sphi 0, %s331
      %s335 = sphi 0, %s334
      %s351 = sphi 0, %s335
    $region4: #{tpu_custom_call.1} parent=1 // loop_header_branch
      %35 = sbr.rel (%p33) target = $region8
    $region5: #{tpu_custom_call.1} parent=1 // loop_body
      %s37 = ssub.s32 %s32, 1
      %s38 = ssub.s32 %s32, 2
      %s45 = sadd.s32 1, %s40
      %p46 = scmp.ge.s32.totalorder %s45, 1
      %s47 = scalar_select %p46, 0, %s45
      %s48 = sadd.s32 1, %s39
      %s49 = scalar_select %p46, %s48, %s39
      %p50 = scmp.ge.s32.totalorder %s49, 6
      %s51 = scalar_select %p50, 0, %s49
      %s52 = ssub.s32 %s40, %s47
      %p53 = scmp.eq.s32.totalorder %s52, 0
      %s55 = sadd.s32 %s54, 1
      %s56 = scalar_select %p53, %s54, %s55
      %p59 = pneg %p53
      %p60 = scmp.eq.s32.totalorder %s32, 5
      %p61 = por %p59, %p60
      %p62 = scmp.ne.s32.totalorder %s54, %s57
      %p63 = scmp.eq.s32.totalorder %s32, 0
      %p64 = por %p62, %p63
      %p65 = scmp.ne.s32.totalorder %s54, %s57
      %p66 = scmp.eq.s32.totalorder %s37, 5
      %p67 = por %p65, %p66
      %p68 = scmp.ne.s32.totalorder %s57, %s58
      %p69 = scmp.eq.s32.totalorder %s37, 0
      %p70 = por %p68, %p69
      %p71 = scmp.ne.s32.totalorder %s57, %s58
      %p72 = scmp.eq.s32.totalorder %s38, 5
      %p73 = por %p71, %p72
      %p75 = scmp.ne.s32.totalorder %s58, %s74
      %p76 = scmp.eq.s32.totalorder %s38, 0
      %p77 = por %p75, %p76
      %s78 = ssub.s32 %s40, %s47
      %p79 = scmp.eq.s32.totalorder %s78, 0
      %s81 = sadd.s32 %s80, 1
      %s82 = scalar_select %p79, %s80, %s81
      %p85 = pneg %p79
      %p86 = scmp.eq.s32.totalorder %s32, 5
      %p87 = por %p85, %p86
      %p88 = scmp.ne.s32.totalorder %s80, %s83
      %p89 = scmp.eq.s32.totalorder %s32, 0
      %p90 = por %p88, %p89
      %p91 = scmp.ne.s32.totalorder %s80, %s83
      %p92 = scmp.eq.s32.totalorder %s37, 5
      %p93 = por %p91, %p92
      %p94 = scmp.ne.s32.totalorder %s83, %s84
      %p95 = scmp.eq.s32.totalorder %s37, 0
      %p96 = por %p94, %p95
      %p97 = scmp.ne.s32.totalorder %s83, %s84
      %p98 = scmp.eq.s32.totalorder %s38, 5
      %p99 = por %p97, %p98
      %p101 = scmp.ne.s32.totalorder %s84, %s100
      %p102 = scmp.eq.s32.totalorder %s38, 0
      %p103 = por %p101, %p102
      %s105 = sadd.s32 %s104, 1
      %p108 = scmp.eq.s32.totalorder %s32, 5
      %p109 = scmp.ne.s32.totalorder %s104, %s106
      %p110 = scmp.eq.s32.totalorder %s32, 0
      %p111 = por %p109, %p110
      %p112 = scmp.ne.s32.totalorder %s104, %s106
      %p113 = scmp.eq.s32.totalorder %s37, 5
      %p114 = por %p112, %p113
      %p115 = scmp.ne.s32.totalorder %s106, %s107
      %p116 = scmp.eq.s32.totalorder %s37, 0
      %p117 = por %p115, %p116
      %p118 = scmp.ne.s32.totalorder %s106, %s107
      %p119 = scmp.eq.s32.totalorder %s38, 5
      %p120 = por %p118, %p119
      %p122 = scmp.ne.s32.totalorder %s107, %s121
      %p123 = scmp.eq.s32.totalorder %s38, 0
      %p124 = por %p122, %p123
      %s125 = ssub.s32 %s39, %s51
      %s126 = ssub.s32 %s40, %s47
      %s127 = sor.u32 %s125, %s126
      %p128 = scmp.eq.s32.totalorder %s127, 0
      %s130 = sadd.s32 %s129, 1
      %s131 = scalar_select %p128, %s129, %s130
      %p134 = pneg %p128
      %p135 = scmp.eq.s32.totalorder %s32, 5
      %p136 = por %p134, %p135
      %p137 = scmp.ne.s32.totalorder %s129, %s132
      %p138 = scmp.eq.s32.totalorder %s32, 0
      %p139 = por %p137, %p138
      %p140 = scmp.ne.s32.totalorder %s129, %s132
      %p141 = scmp.eq.s32.totalorder %s37, 5
      %p142 = por %p140, %p141
      %p143 = scmp.ne.s32.totalorder %s132, %s133
      %p144 = scmp.eq.s32.totalorder %s37, 0
      %p145 = por %p143, %p144
      %p146 = scmp.ne.s32.totalorder %s132, %s133
      %p147 = scmp.eq.s32.totalorder %s38, 5
      %p148 = por %p146, %p147
      %p150 = scmp.ne.s32.totalorder %s133, %s149
      %p151 = scmp.eq.s32.totalorder %s38, 0
      %p152 = por %p150, %p151
      %s153 = sadd.s32 %s40, 1
      %s154 = smul.u32 %s153, 2
      %s155 = sadd.s32 %s47, 1
      %s156 = smul.u32 %s155, 2
      %s157 = ssub.s32 %s39, %s51
      %s158 = ssub.s32 %s154, %s156
      %s159 = sor.u32 %s157, %s158
      %p160 = scmp.eq.s32.totalorder %s159, 0
      %s162 = sadd.s32 %s161, 1
      %s163 = scalar_select %p160, %s161, %s162
      %p166 = pneg %p160
      %p167 = scmp.eq.s32.totalorder %s32, 5
      %p168 = por %p166, %p167
      %p169 = scmp.ne.s32.totalorder %s161, %s164
      %p170 = scmp.eq.s32.totalorder %s32, 0
      %p171 = por %p169, %p170
      %p172 = scmp.ne.s32.totalorder %s161, %s164
      %p173 = scmp.eq.s32.totalorder %s37, 5
      %p174 = por %p172, %p173
      %p175 = scmp.ne.s32.totalorder %s164, %s165
      %p176 = scmp.eq.s32.totalorder %s37, 0
      %p177 = por %p175, %p176
      %p178 = scmp.ne.s32.totalorder %s164, %s165
      %p179 = scmp.eq.s32.totalorder %s38, 5
      %p180 = por %p178, %p179
      %p182 = scmp.ne.s32.totalorder %s165, %s181
      %p183 = scmp.eq.s32.totalorder %s38, 0
      %p184 = por %p182, %p183
      %s185 = ssub.s32 %s39, %s51
      %s186 = ssub.s32 %s40, %s47
      %s187 = sor.u32 %s185, %s186
      %p188 = scmp.eq.s32.totalorder %s187, 0
      %s190 = sadd.s32 %s189, 1
      %s191 = scalar_select %p188, %s189, %s190
      %p194 = pneg %p188
      %p195 = scmp.eq.s32.totalorder %s32, 5
      %p196 = por %p194, %p195
      %p197 = scmp.ne.s32.totalorder %s189, %s192
      %p198 = scmp.eq.s32.totalorder %s32, 0
      %p199 = por %p197, %p198
      %p200 = scmp.ne.s32.totalorder %s189, %s192
      %p201 = scmp.eq.s32.totalorder %s37, 5
      %p202 = por %p200, %p201
      %p203 = scmp.ne.s32.totalorder %s192, %s193
      %p204 = scmp.eq.s32.totalorder %s37, 0
      %p205 = por %p203, %p204
      %p206 = scmp.ne.s32.totalorder %s192, %s193
      %p207 = scmp.eq.s32.totalorder %s38, 5
      %p208 = por %p206, %p207
      %p210 = scmp.ne.s32.totalorder %s193, %s209
      %p211 = scmp.eq.s32.totalorder %s38, 0
      %p212 = por %p210, %p211
      %s213 = sadd.s32 %s40, 1
      %s214 = smul.u32 %s213, 2
      %s215 = sadd.s32 %s47, 1
      %s216 = smul.u32 %s215, 2
      %s217 = ssub.s32 %s39, %s51
      %s218 = ssub.s32 %s214, %s216
      %s219 = sor.u32 %s217, %s218
      %p220 = scmp.eq.s32.totalorder %s219, 0
      %s222 = sadd.s32 %s221, 1
      %s223 = scalar_select %p220, %s221, %s222
      %p226 = pneg %p220
      %p227 = scmp.eq.s32.totalorder %s32, 5
      %p228 = por %p226, %p227
      %p229 = scmp.ne.s32.totalorder %s221, %s224
      %p230 = scmp.eq.s32.totalorder %s32, 0
      %p231 = por %p229, %p230
      %p232 = scmp.ne.s32.totalorder %s221, %s224
      %p233 = scmp.eq.s32.totalorder %s37, 5
      %p234 = por %p232, %p233
      %p235 = scmp.ne.s32.totalorder %s224, %s225
      %p236 = scmp.eq.s32.totalorder %s37, 0
      %p237 = por %p235, %p236
      %p238 = scmp.ne.s32.totalorder %s224, %s225
      %p239 = scmp.eq.s32.totalorder %s38, 5
      %p240 = por %p238, %p239
      %p242 = scmp.ne.s32.totalorder %s225, %s241
      %p243 = scmp.eq.s32.totalorder %s38, 0
      %p244 = por %p242, %p243
      %p245 = scmp.lt.s32.totalorder %s39, 0
      %s246 = ssub.s32 0, %s39
      %s247 = scalar_select %p245, %s246, %s39
      %s248 = sdiv.u32.pop %s247, 3
      %s249 = srem.u32.pop %s247, 3
      %s250 = ssub.s32 0, %s249
      %s251 = scalar_select %p245, %s250, %s249
      %p252 = scmp.ne.s32.totalorder %s251, 0
      %p253 = scmp.lt.s32.totalorder %s251, 0
      %p254 = pnand %p253, %p252
      %p255 = pneg %p254
      %s256 = sadd.s32 %s251, 3
      %s257 = scalar_select %p255, %s256, %s251
      %p258 = scmp.lt.s32.totalorder %s51, 0
      %s259 = ssub.s32 0, %s51
      %s260 = scalar_select %p258, %s259, %s51
      %s261 = sdiv.u32.pop %s260, 3
      %s262 = srem.u32.pop %s260, 3
      %s263 = ssub.s32 0, %s262
      %s264 = scalar_select %p258, %s263, %s262
      %p265 = scmp.ne.s32.totalorder %s264, 0
      %p266 = scmp.lt.s32.totalorder %s264, 0
      %p267 = pnand %p266, %p265
      %p268 = pneg %p267
      %s269 = sadd.s32 %s264, 3
      %s270 = scalar_select %p268, %s269, %s264
      %s271 = ssub.s32 %s257, %s270
      %s272 = ssub.s32 %s40, %s47
      %s273 = sor.u32 %s271, %s272
      %p274 = scmp.eq.s32.totalorder %s273, 0
      %s276 = sadd.s32 %s275, 1
      %s277 = scalar_select %p274, %s275, %s276
      %p280 = pneg %p274
      %p281 = scmp.eq.s32.totalorder %s32, 5
      %p282 = por %p280, %p281
      %p283 = scmp.ne.s32.totalorder %s275, %s278
      %p284 = scmp.eq.s32.totalorder %s32, 0
      %p285 = por %p283, %p284
      %p286 = scmp.ne.s32.totalorder %s275, %s278
      %p287 = scmp.eq.s32.totalorder %s37, 5
      %p288 = por %p286, %p287
      %p289 = scmp.ne.s32.totalorder %s278, %s279
      %p290 = scmp.eq.s32.totalorder %s37, 0
      %p291 = por %p289, %p290
      %p292 = scmp.ne.s32.totalorder %s278, %s279
      %p293 = scmp.eq.s32.totalorder %s38, 5
      %p294 = por %p292, %p293
      %p296 = scmp.ne.s32.totalorder %s279, %s295
      %p297 = scmp.eq.s32.totalorder %s38, 0
      %p298 = por %p296, %p297
      %s299 = ssub.s32 %s39, %s51
      %s300 = ssub.s32 %s40, %s47
      %s301 = sor.u32 %s299, %s300
      %p302 = scmp.eq.s32.totalorder %s301, 0
      %s304 = sadd.s32 %s303, 1
      %s305 = scalar_select %p302, %s303, %s304
      %p308 = pneg %p302
      %p309 = scmp.eq.s32.totalorder %s32, 5
      %p310 = por %p308, %p309
      %p311 = scmp.ne.s32.totalorder %s303, %s306
      %p312 = scmp.eq.s32.totalorder %s32, 0
      %p313 = por %p311, %p312
      %p314 = scmp.ne.s32.totalorder %s303, %s306
      %p315 = scmp.eq.s32.totalorder %s37, 5
      %p316 = por %p314, %p315
      %p317 = scmp.ne.s32.totalorder %s306, %s307
      %p318 = scmp.eq.s32.totalorder %s37, 0
      %p319 = por %p317, %p318
      %p320 = scmp.ne.s32.totalorder %s306, %s307
      %p321 = scmp.eq.s32.totalorder %s38, 5
      %p322 = por %p320, %p321
      %p324 = scmp.ne.s32.totalorder %s307, %s323
      %p325 = scmp.eq.s32.totalorder %s38, 0
      %p326 = por %p324, %p325
      %s327 = ssub.s32 %s39, %s51
      %s328 = ssub.s32 %s40, %s47
      %s329 = sor.u32 %s327, %s328
      %p330 = scmp.eq.s32.totalorder %s329, 0
      %s332 = sadd.s32 %s331, 1
      %s333 = scalar_select %p330, %s331, %s332
      %p336 = pneg %p330
      %p337 = scmp.eq.s32.totalorder %s32, 5
      %p338 = por %p336, %p337
      %p339 = scmp.ne.s32.totalorder %s331, %s334
      %p340 = scmp.eq.s32.totalorder %s32, 0
      %p341 = por %p339, %p340
      %p342 = scmp.ne.s32.totalorder %s331, %s334
      %p343 = scmp.eq.s32.totalorder %s37, 5
      %p344 = por %p342, %p343
      %p345 = scmp.ne.s32.totalorder %s334, %s335
      %p346 = scmp.eq.s32.totalorder %s37, 0
      %p347 = por %p345, %p346
      %p348 = scmp.ne.s32.totalorder %s334, %s335
      %p349 = scmp.eq.s32.totalorder %s38, 5
      %p350 = por %p348, %p349
      %p352 = scmp.ne.s32.totalorder %s335, %s351
      %p353 = scmp.eq.s32.totalorder %s38, 0
      %p354 = por %p352, %p353
      %p355 = scmp.le.s32.totalorder 1, %s32
      %p356 = scmp.lt.s32.totalorder %s32, 7
      %p357 = pnand %p355, %p356
      %p358 = pneg %p357
      // Predicated region
      $region9: #{tpu_custom_call.1} parent=5 // pred_check
        _
      $region10: #{tpu_custom_call.1} parent=5 // pred_check_branch
        %360 = sbr.rel (%p357) target = $region12
      $region11: #{tpu_custom_call.1} parent=5 // pred_region
        %s361 = ssub.s32 %s32, 1
        // Predicated region
        $region13: #{tpu_custom_call.1} parent=11 // pred_check
          %p362 = pneg %p70
        $region14: #{tpu_custom_call.1} parent=11 // pred_check_branch
          %364 = sbr.rel (%p362) target = $region16
        $region15: #{tpu_custom_call.1} parent=11 // pred_region
          %p365 = scmp.lt.s32.totalorder %s42, 0
          %s366 = scalar_select %p365, %s42, 0
          %s367 = smul.addr %s366, 4
          %s368 = smul.addr %s367, 4
          %s369 = scalar_lea.vmem %s0, %s368
        $region16: #{tpu_custom_call.1} parent=11 // pred_fallthru
          _
        // Predicated region
        $region17: #{tpu_custom_call.1} parent=11 // pred_check
          %p370 = pneg %p96
        $region18: #{tpu_custom_call.1} parent=11 // pred_check_branch
          %372 = sbr.rel (%p370) target = $region20
        $region19: #{tpu_custom_call.1} parent=11 // pred_region
          %p373 = scmp.lt.s32.totalorder %s42, 0
          %s374 = scalar_select %p373, %s42, 0
          %s375 = smul.addr %s374, 4
          %s376 = smul.addr %s375, 4
          %s377 = scalar_lea.vmem %s1, %s376
        $region20: #{tpu_custom_call.1} parent=11 // pred_fallthru
          _
        // Predicated region
        $region21: #{tpu_custom_call.1} parent=11 // pred_check
          %p378 = pneg %p117
        $region22: #{tpu_custom_call.1} parent=11 // pred_check_branch
          %380 = sbr.rel (%p378) target = $region24
        $region23: #{tpu_custom_call.1} parent=11 // pred_region
          %s382 = ssub.s32 1024, 1024
          %383 = vsyncadd [#allocation3], %s382
          %s384 = sshll.u32 [#allocation2], 4
          %s385 = int_to_ptr.vmem [resolvable:$true] %s384
          %390 = dma.hbm_to_vmem [thread:$0]  %s2, 1024, %s385, [#allocation3], 64, 64, 4
        $region24: #{tpu_custom_call.1} parent=11 // pred_fallthru
          _
      $region12: #{tpu_custom_call.1} parent=5 // pred_fallthru
        _
      %p391 = scmp.lt.s32.totalorder %s32, 6
      // Predicated region
      $region25: #{tpu_custom_call.1} parent=5 // pred_check
        %p392 = pneg %p391
      $region26: #{tpu_custom_call.1} parent=5 // pred_check_branch
        %394 = sbr.rel (%p392) target = $region28
      $region27: #{tpu_custom_call.1} parent=5 // pred_region
        // Predicated region
        $region29: #{tpu_custom_call.1} parent=27 // pred_check
          %p395 = pneg %p139
        $region30: #{tpu_custom_call.1} parent=27 // pred_check_branch
          %397 = sbr.rel (%p395) target = $region32
        $region31: #{tpu_custom_call.1} parent=27 // pred_region
          %s398 = sand.u32 %s32, 1
          %s399 = scalar_lea.sflag [#allocation6], %s398
          %s400 = sand.u32 %s129, 1
          %s401 = smul.addr %s400, 32
          %s402 = scalar_lea.vmem [#allocation5], %s401
          %s403 = smul.u32 4, %s40
          %s405 = ssub.s32 512, 512
          %406 = vsyncadd %s399, %s405
          %s407 = smul.addr %s39, 8
          %s408 = sadd.s32 %s403, %s407
          %s409 = smul.addr %s408, 128
          %s410 = scalar_lea.hbm %s3, %s409
          %s411 = sshll.u32 %s402, 4
          %s412 = int_to_ptr.vmem [resolvable:$true] %s411
          %417 = dma.hbm_to_vmem [thread:$0]  %s410, 512, %s412, %s399, 128, 128, 8
        $region32: #{tpu_custom_call.1} parent=27 // pred_fallthru
          _
        // Predicated region
        $region33: #{tpu_custom_call.1} parent=27 // pred_check
          %p418 = pneg %p171
        $region34: #{tpu_custom_call.1} parent=27 // pred_check_branch
          %420 = sbr.rel (%p418) target = $region36
        $region35: #{tpu_custom_call.1} parent=27 // pred_region
          %s421 = sand.u32 %s32, 1
          %s422 = scalar_lea.sflag [#allocation6], %s421
          %s423 = sand.u32 %s161, 1
          %s424 = smul.addr %s423, 16
          %s425 = scalar_lea.vmem [#allocation7], %s424
          %s426 = sadd.s32 %s40, 1
          %s427 = smul.u32 %s426, 2
          %s428 = smul.u32 2, %s427
          %s430 = ssub.s32 256, 256
          %431 = vsyncadd %s422, %s430
          %s432 = smul.addr %s39, 8
          %s433 = sadd.s32 %s428, %s432
          %s434 = smul.addr %s433, 128
          %s435 = scalar_lea.hbm %s4, %s434
          %s436 = sshll.u32 %s425, 4
          %s437 = int_to_ptr.vmem [resolvable:$true] %s436
          %442 = dma.hbm_to_vmem [thread:$0]  %s435, 256, %s437, %s422, 128, 128, 8
        $region36: #{tpu_custom_call.1} parent=27 // pred_fallthru
          _
        // Predicated region
        $region37: #{tpu_custom_call.1} parent=27 // pred_check
          %p443 = pneg %p199
        $region38: #{tpu_custom_call.1} parent=27 // pred_check_branch
          %445 = sbr.rel (%p443) target = $region40
        $region39: #{tpu_custom_call.1} parent=27 // pred_region
          %s446 = sand.u32 %s32, 1
          %s447 = scalar_lea.sflag [#allocation9], %s446
          %s448 = sand.u32 %s189, 1
          %s449 = smul.addr %s448, 32
          %s450 = scalar_lea.vmem [#allocation8], %s449
          %s451 = smul.u32 4, %s40
          %s453 = ssub.s32 512, 512
          %454 = vsyncadd %s447, %s453
          %s455 = smul.addr %s39, 8
          %s456 = sadd.s32 %s451, %s455
          %s457 = smul.addr %s456, 128
          %s458 = scalar_lea.hbm %s5, %s457
          %s459 = sshll.u32 %s450, 4
          %s460 = int_to_ptr.vmem [resolvable:$true] %s459
          %465 = dma.hbm_to_vmem [thread:$0]  %s458, 512, %s460, %s447, 128, 128, 8
        $region40: #{tpu_custom_call.1} parent=27 // pred_fallthru
          _
        // Predicated region
        $region41: #{tpu_custom_call.1} parent=27 // pred_check
          %p466 = pneg %p231
        $region42: #{tpu_custom_call.1} parent=27 // pred_check_branch
          %468 = sbr.rel (%p466) target = $region44
        $region43: #{tpu_custom_call.1} parent=27 // pred_region
          %s469 = sand.u32 %s32, 1
          %s470 = scalar_lea.sflag [#allocation9], %s469
          %s471 = sand.u32 %s221, 1
          %s472 = smul.addr %s471, 16
          %s473 = scalar_lea.vmem [#allocation10], %s472
          %s474 = sadd.s32 %s40, 1
          %s475 = smul.u32 %s474, 2
          %s476 = smul.u32 2, %s475
          %s478 = ssub.s32 256, 256
          %479 = vsyncadd %s470, %s478
          %s480 = smul.addr %s39, 8
          %s481 = sadd.s32 %s476, %s480
          %s482 = smul.addr %s481, 128
          %s483 = scalar_lea.hbm %s6, %s482
          %s484 = sshll.u32 %s473, 4
          %s485 = int_to_ptr.vmem [resolvable:$true] %s484
          %490 = dma.hbm_to_vmem [thread:$0]  %s483, 256, %s485, %s470, 128, 128, 8
        $region44: #{tpu_custom_call.1} parent=27 // pred_fallthru
          _
        // Predicated region
        $region45: #{tpu_custom_call.1} parent=27 // pred_check
          %p491 = pneg %p285
        $region46: #{tpu_custom_call.1} parent=27 // pred_check_branch
          %493 = sbr.rel (%p491) target = $region48
        $region47: #{tpu_custom_call.1} parent=27 // pred_region
          %s494 = sand.u32 %s275, 1
          %s495 = scalar_lea.sflag [#allocation12], %s494
          %s496 = sand.u32 %s275, 1
          %s497 = smul.addr %s496, 32
          %s498 = scalar_lea.vmem [#allocation11], %s497
          %p499 = scmp.lt.s32.totalorder %s39, 0
          %s500 = ssub.s32 0, %s39
          %s501 = scalar_select %p499, %s500, %s39
          %s502 = sdiv.u32.pop %s501, 3
          %s503 = srem.u32.pop %s501, 3
          %s504 = ssub.s32 0, %s503
          %s505 = scalar_select %p499, %s504, %s503
          %p506 = scmp.ne.s32.totalorder %s505, 0
          %p507 = scmp.lt.s32.totalorder %s505, 0
          %p508 = pnand %p507, %p506
          %p509 = pneg %p508
          %s510 = sadd.s32 %s505, 3
          %s511 = scalar_select %p509, %s510, %s505
          %s512 = smul.u32 4, %s40
          %s514 = ssub.s32 512, 512
          %515 = vsyncadd %s495, %s514
          %s516 = smul.addr %s511, 8
          %s517 = sadd.s32 %s512, %s516
          %s518 = smul.addr %s517, 128
          %s519 = scalar_lea.hbm %s7, %s518
          %s520 = sshll.u32 %s498, 4
          %s521 = int_to_ptr.vmem [resolvable:$true] %s520
          %526 = dma.hbm_to_vmem [thread:$0]  %s519, 512, %s521, %s495, 128, 128, 8
        $region48: #{tpu_custom_call.1} parent=27 // pred_fallthru
          _
      $region28: #{tpu_custom_call.1} parent=5 // pred_fallthru
        _
      %p527 = scmp.le.s32.totalorder 1, %s32
      %p528 = scmp.lt.s32.totalorder %s32, 7
      %p529 = pnand %p527, %p528
      %p530 = pneg %p529
      // Predicated region
      $region49: #{tpu_custom_call.1} parent=5 // pred_check
        _
      $region50: #{tpu_custom_call.1} parent=5 // pred_check_branch
        %532 = sbr.rel (%p529) target = $region52
      $region51: #{tpu_custom_call.1} parent=5 // pred_region
        %s533 = ssub.s32 %s32, 1
        // Predicated region
        $region53: #{tpu_custom_call.1} parent=51 // pred_check
          %p534 = pneg %p117
        $region54: #{tpu_custom_call.1} parent=51 // pred_check_branch
          %536 = sbr.rel (%p534) target = $region56
        $region55: #{tpu_custom_call.1} parent=51 // pred_region
          %537 = dma.done [#allocation3], 1024
        $region56: #{tpu_custom_call.1} parent=51 // pred_fallthru
          _
        %s538 = sand.u32 %s37, 1
        %s539 = scalar_lea.sflag [#allocation6], %s538
        %s540 = sand.u32 %s132, 1
        %s541 = smul.addr %s540, 32
        %s542 = scalar_lea.vmem [#allocation5], %s541
        // Predicated region
        $region57: #{tpu_custom_call.1} parent=51 // pred_check
          %p543 = pneg %p145
        $region58: #{tpu_custom_call.1} parent=51 // pred_check_branch
          %545 = sbr.rel (%p543) target = $region60
        $region59: #{tpu_custom_call.1} parent=51 // pred_region
          %546 = dma.done %s539, 512
        $region60: #{tpu_custom_call.1} parent=51 // pred_fallthru
          _
        %s547 = sand.u32 %s37, 1
        %s548 = scalar_lea.sflag [#allocation6], %s547
        %s549 = sand.u32 %s164, 1
        %s550 = smul.addr %s549, 16
        %s551 = scalar_lea.vmem [#allocation7], %s550
        // Predicated region
        $region61: #{tpu_custom_call.1} parent=51 // pred_check
          %p552 = pneg %p177
        $region62: #{tpu_custom_call.1} parent=51 // pred_check_branch
          %554 = sbr.rel (%p552) target = $region64
        $region63: #{tpu_custom_call.1} parent=51 // pred_region
          %555 = dma.done %s548, 256
        $region64: #{tpu_custom_call.1} parent=51 // pred_fallthru
          _
        %s556 = sand.u32 %s37, 1
        %s557 = scalar_lea.sflag [#allocation9], %s556
        %s558 = sand.u32 %s192, 1
        %s559 = smul.addr %s558, 32
        %s560 = scalar_lea.vmem [#allocation8], %s559
        // Predicated region
        $region65: #{tpu_custom_call.1} parent=51 // pred_check
          %p561 = pneg %p205
        $region66: #{tpu_custom_call.1} parent=51 // pred_check_branch
          %563 = sbr.rel (%p561) target = $region68
        $region67: #{tpu_custom_call.1} parent=51 // pred_region
          %564 = dma.done %s557, 512
        $region68: #{tpu_custom_call.1} parent=51 // pred_fallthru
          _
        %s565 = sand.u32 %s37, 1
        %s566 = scalar_lea.sflag [#allocation9], %s565
        %s567 = sand.u32 %s224, 1
        %s568 = smul.addr %s567, 16
        %s569 = scalar_lea.vmem [#allocation10], %s568
        // Predicated region
        $region69: #{tpu_custom_call.1} parent=51 // pred_check
          %p570 = pneg %p237
        $region70: #{tpu_custom_call.1} parent=51 // pred_check_branch
          %572 = sbr.rel (%p570) target = $region72
        $region71: #{tpu_custom_call.1} parent=51 // pred_region
          %573 = dma.done %s566, 256
        $region72: #{tpu_custom_call.1} parent=51 // pred_fallthru
          _
        %s574 = sand.u32 %s278, 1
        %s575 = scalar_lea.sflag [#allocation12], %s574
        %s576 = sand.u32 %s278, 1
        %s577 = smul.addr %s576, 32
        %s578 = scalar_lea.vmem [#allocation11], %s577
        // Predicated region
        $region73: #{tpu_custom_call.1} parent=51 // pred_check
          %p579 = pneg %p291
        $region74: #{tpu_custom_call.1} parent=51 // pred_check_branch
          %581 = sbr.rel (%p579) target = $region76
        $region75: #{tpu_custom_call.1} parent=51 // pred_region
          %582 = dma.done %s575, 512
        $region76: #{tpu_custom_call.1} parent=51 // pred_fallthru
          _
        %p583 = scmp.lt.s32.totalorder %s42, 0
        %s584 = scalar_select %p583, %s42, 0
        %s585 = smul.addr %s584, 4
        %s586 = smul.addr %s585, 4
        %s587 = scalar_lea.vmem %s0, %s586
        %p588 = pneg %p70
        %p589 = pneg %p67
        %p590 = scmp.lt.s32.totalorder %s42, 0
        %s591 = scalar_select %p590, %s42, 0
        %s592 = smul.addr %s591, 4
        %s593 = smul.addr %s592, 4
        %s594 = scalar_lea.vmem %s1, %s593
        %p595 = pneg %p96
        %p596 = pneg %p93
        %p597 = pneg %p117
        %p598 = pneg %p114
        %s599 = sand.u32 %s37, 1
        %s600 = scalar_lea.sflag [#allocation6], %s599
        %s601 = sand.u32 %s132, 1
        %s602 = smul.addr %s601, 32
        %s603 = scalar_lea.vmem [#allocation5], %s602
        %p604 = pneg %p145
        %p605 = pneg %p142
        %s606 = sand.u32 %s37, 1
        %s607 = scalar_lea.sflag [#allocation6], %s606
        %s608 = sand.u32 %s164, 1
        %s609 = smul.addr %s608, 16
        %s610 = scalar_lea.vmem [#allocation7], %s609
        %p611 = pneg %p177
        %p612 = pneg %p174
        %s613 = sand.u32 %s37, 1
        %s614 = scalar_lea.sflag [#allocation9], %s613
        %s615 = sand.u32 %s192, 1
        %s616 = smul.addr %s615, 32
        %s617 = scalar_lea.vmem [#allocation8], %s616
        %p618 = pneg %p205
        %p619 = pneg %p202
        %s620 = sand.u32 %s37, 1
        %s621 = scalar_lea.sflag [#allocation9], %s620
        %s622 = sand.u32 %s224, 1
        %s623 = smul.addr %s622, 16
        %s624 = scalar_lea.vmem [#allocation10], %s623
        %p625 = pneg %p237
        %p626 = pneg %p234
        %s627 = sand.u32 %s278, 1
        %s628 = scalar_lea.sflag [#allocation12], %s627
        %s629 = sand.u32 %s278, 1
        %s630 = smul.addr %s629, 32
        %s631 = scalar_lea.vmem [#allocation11], %s630
        %p632 = pneg %p291
        %p633 = pneg %p288
        %p634 = pneg %p319
        %p635 = pneg %p316
        %s636 = sand.u32 %s306, 1
        %s637 = scalar_lea.sflag [#allocation4], %s636
        %s638 = sand.u32 %s306, 1
        %s639 = smul.addr %s638, 8
        %s640 = scalar_lea.vmem [#allocation13], %s639
        %p641 = pneg %p347
        %p642 = pneg %p344
        %s643 = sand.u32 %s334, 1
        %s644 = scalar_lea.sflag [#allocation15], %s643
        %s645 = sand.u32 %s334, 1
        %s646 = smul.addr %s645, 8
        %s647 = scalar_lea.vmem [#allocation14], %s646
        %p648 = scmp.lt.s32.totalorder %s42, 0
        %s649 = scalar_select %p648, %s42, 0
        %s650 = smul.addr %s649, 4
        %s651 = smul.addr %s650, 4
        %s652 = scalar_lea.vmem %s0, %s651
        %p653 = scmp.lt.s32.totalorder %s42, 0
        %s654 = scalar_select %p653, %s42, 0
        %s655 = smul.addr %s654, 4
        %s656 = smul.addr %s655, 4
        %s657 = scalar_lea.vmem %s1, %s656
        %s658 = smul.u32 4, %s42
        %s659 = sadd.s32 %s42, 1
        %s660 = smul.u32 %s659, 2
        %s661 = smul.u32 2, %s660
        %s662 = smul.u32 4, %s42
        %s663 = sadd.s32 %s42, 1
        %s664 = smul.u32 %s663, 2
        %s665 = smul.u32 2, %s664
        %p666 = scmp.lt.s32.totalorder %s41, 0
        %s667 = ssub.s32 0, %s41
        %s668 = scalar_select %p666, %s667, %s41
        %s669 = sdiv.u32.pop %s668, 3
        %s670 = srem.u32.pop %s668, 3
        %s671 = ssub.s32 0, %s670
        %s672 = scalar_select %p666, %s671, %s670
        %p673 = scmp.ne.s32.totalorder %s672, 0
        %p674 = scmp.lt.s32.totalorder %s672, 0
        %p675 = pnand %p674, %p673
        %p676 = pneg %p675
        %s677 = sadd.s32 %s672, 3
        %s678 = scalar_select %p676, %s677, %s672
        %s679 = smul.u32 4, %s42
        %v681 = vld [vmem:[%s652] sm:$0xf]
        %v682 = vld [vmem:[%s652 + $0x4] sm:$0xf]
        %v683 = vld [vmem:[%s652 + $0x8] sm:$0xf]
        %v684 = vld [vmem:[%s652 + $0xc] sm:$0xf]
        %v685 = vld [vmem:[%s657] sm:$0xf]
        %v686 = vld [vmem:[%s657 + $0x4] sm:$0xf]
        %v687 = vld [vmem:[%s657 + $0x8] sm:$0xf]
        %v688 = vld [vmem:[%s657 + $0xc] sm:$0xf]
        %v689 = vld [vmem:[%s542] sm:$0xff]
        %v690 = vld [vmem:[%s542 + $0x8] sm:$0xff]
        %v691 = vld [vmem:[%s542 + $0x10] sm:$0xff]
        %v692 = vld [vmem:[%s542 + $0x18] sm:$0xff]
        %v693 = vld [vmem:[%s551] sm:$0xff]
        %v694 = vld [vmem:[%s551 + $0x8] sm:$0xff]
        %v695 = vld [vmem:[%s560] sm:$0xff]
        %v696 = vld [vmem:[%s560 + $0x8] sm:$0xff]
        %v697 = vld [vmem:[%s560 + $0x10] sm:$0xff]
        %v698 = vld [vmem:[%s560 + $0x18] sm:$0xff]
        %v699 = vld [vmem:[%s569] sm:$0xff]
        %v700 = vld [vmem:[%s569 + $0x8] sm:$0xff]
        %v701 = vpack.c.bf16 %v690, %v689
        %v702 = vpack.c.bf16 %v692, %v691
        %v703 = vpack.c.bf16 %v694, %v693
        %v708 = vunpack.c.l.b16 %v685
        %v709 = vunpack.c.l.b16 %v686
        %v710 = vunpack.c.l.b16 %v687
        %v711 = vunpack.c.l.b16 %v688
        %v712 = vpack.c.b16 %v709, %v708
        %v713 = vpack.c.b16 %v711, %v710
        %vm714 = vcmask 130048
        %v716 = vsel %vm714, %v712, 0
        %v719 = vsel %vm714, %v713, 0
        %721 = vmatprep.subr.bf16.mxu0 0
        %722 = vmatpush1.bf16.msra.mxu0 %v703
        %723 = vmatprep.subr.bf16.mxu0 0
        %724 = vmatpush1.bf16.msra.mxu0 0
        %725 = vmatprep.subr.bf16.mxu0 0
        %726 = vmatpush1.bf16.msra.mxu0 0
        %727 = vmatprep.subr.bf16.mxu0 0
        %728 = vmatpush1.bf16.msra.mxu0 0
        %729 = vmatprep.subr.bf16.mxu0 0
        %730 = vmatpush1.bf16.msra.mxu0 0
        %731 = vmatprep.subr.bf16.mxu0 0
        %732 = vmatpush1.bf16.msra.mxu0 0
        %733 = vmatprep.subr.bf16.mxu0 0
        %734 = vmatpush1.bf16.msra.mxu0 0
        %735 = vmatprep.subr.bf16.mxu0 0
        %736 = vmatpush1.bf16.msra.mxu0 0
        %737 = vmatprep.subr.bf16.mxu0 0
        %738 = vmatpush1.bf16.msra.mxu0 0
        %739 = vmatprep.subr.bf16.mxu0 0
        %740 = vmatpush1.bf16.msra.mxu0 0
        %741 = vmatprep.subr.bf16.mxu0 0
        %742 = vmatpush1.bf16.msra.mxu0 0
        %743 = vmatprep.subr.bf16.mxu0 0
        %744 = vmatpush1.bf16.msra.mxu0 0
        %745 = vmatprep.subr.bf16.mxu0 0
        %746 = vmatpush1.bf16.msra.mxu0 0
        %747 = vmatprep.subr.bf16.mxu0 0
        %748 = vmatpush1.bf16.msra.mxu0 0
        %749 = vmatprep.subr.bf16.mxu0 0
        %750 = vmatpush1.bf16.msra.mxu0 0
        %751 = vmatprep.subr.bf16.mxu0 0
        %752 = vmatpush1.bf16.msra.mxu0 0
        %753 = vmatprep.mubr.bf16.mxu0 0
        %754 = vmatmul.mubr.bf16.gmra.mrb[0].mxu0 %v716
        %v755 = vpop.f32.mrb[0].mxu0
        %v756 = vadd.f32 0.0, %v755
        %v757 = vpop.f32.mrb[0].mxu0
        %v758 = vpop.f32.mrb[0].mxu0
        %v759 = vadd.f32 0.0, %v758
        %v760 = vpop.f32.mrb[0].mxu0
        %761 = vmatprep.mubr.bf16.mxu0 0
        %762 = vmatmul.mubr.bf16.gmra.mrb[0].mxu0 %v719
        %v763 = vpop.f32.mrb[0].mxu0
        %v764 = vadd.f32 0.0, %v763
        %v765 = vpop.f32.mrb[0].mxu0
        %v766 = vpop.f32.mrb[0].mxu0
        %v767 = vadd.f32 0.0, %v766
        %v768 = vpop.f32.mrb[0].mxu0
        %769 = vdwg.mxu0
        %v774 = vunpack.c.l.b16 %v681
        %v775 = vunpack.c.l.b16 %v682
        %v776 = vunpack.c.l.b16 %v683
        %v777 = vunpack.c.l.b16 %v684
        %v778 = vpack.c.b16 %v775, %v774
        %v779 = vpack.c.b16 %v777, %v776
        %vm780 = vcmask 261120
        %v782 = vsel %vm780, %v778, 0
        %v785 = vsel %vm780, %v779, 0
        %787 = vmatprep.subr.bf16.mxu0 0
        %788 = vmatpush1.bf16.msra.mxu0 %v701
        %789 = vmatprep.subr.bf16.mxu0 0
        %790 = vmatpush1.bf16.msra.mxu0 %v702
        %791 = vmatprep.subr.bf16.mxu0 0
        %792 = vmatpush1.bf16.msra.mxu0 0
        %793 = vmatprep.subr.bf16.mxu0 0
        %794 = vmatpush1.bf16.msra.mxu0 0
        %795 = vmatprep.subr.bf16.mxu0 0
        %796 = vmatpush1.bf16.msra.mxu0 0
        %797 = vmatprep.subr.bf16.mxu0 0
        %798 = vmatpush1.bf16.msra.mxu0 0
        %799 = vmatprep.subr.bf16.mxu0 0
        %800 = vmatpush1.bf16.msra.mxu0 0
        %801 = vmatprep.subr.bf16.mxu0 0
        %802 = vmatpush1.bf16.msra.mxu0 0
        %803 = vmatprep.subr.bf16.mxu0 0
        %804 = vmatpush1.bf16.msra.mxu0 0
        %805 = vmatprep.subr.bf16.mxu0 0
        %806 = vmatpush1.bf16.msra.mxu0 0
        %807 = vmatprep.subr.bf16.mxu0 0
        %808 = vmatpush1.bf16.msra.mxu0 0
        %809 = vmatprep.subr.bf16.mxu0 0
        %810 = vmatpush1.bf16.msra.mxu0 0
        %811 = vmatprep.subr.bf16.mxu0 0
        %812 = vmatpush1.bf16.msra.mxu0 0
        %813 = vmatprep.subr.bf16.mxu0 0
        %814 = vmatpush1.bf16.msra.mxu0 0
        %815 = vmatprep.subr.bf16.mxu0 0
        %816 = vmatpush1.bf16.msra.mxu0 0
        %817 = vmatprep.subr.bf16.mxu0 0
        %818 = vmatpush1.bf16.msra.mxu0 0
        %819 = vmatprep.mubr.bf16.mxu0 0
        %820 = vmatmul.mubr.bf16.gmra.mrb[0].mxu0 %v782
        %v821 = vpop.f32.mrb[0].mxu0
        %v822 = vadd.f32 %v756, %v821
        %v823 = vpop.f32.mrb[0].mxu0
        %v824 = vpop.f32.mrb[0].mxu0
        %v825 = vadd.f32 %v759, %v824
        %v826 = vpop.f32.mrb[0].mxu0
        %827 = vmatprep.mubr.bf16.mxu0 0
        %828 = vmatmul.mubr.bf16.gmra.mrb[0].mxu0 %v785
        %v829 = vpop.f32.mrb[0].mxu0
        %v830 = vadd.f32 %v764, %v829
        %v831 = vpop.f32.mrb[0].mxu0
        %v832 = vpop.f32.mrb[0].mxu0
        %v833 = vadd.f32 %v767, %v832
        %v834 = vpop.f32.mrb[0].mxu0
        %835 = vdwg.mxu0
        %v836 = vpack.c.bf16 %v696, %v695
        %v837 = vpack.c.bf16 %v698, %v697
        %v838 = vpack.c.bf16 %v700, %v699
        %839 = vmatprep.subr.bf16.mxu0 0
        %840 = vmatpush1.bf16.msra.mxu0 %v838
        %841 = vmatprep.subr.bf16.mxu0 0
        %842 = vmatpush1.bf16.msra.mxu0 0
        %843 = vmatprep.subr.bf16.mxu0 0
        %844 = vmatpush1.bf16.msra.mxu0 0
        %845 = vmatprep.subr.bf16.mxu0 0
        %846 = vmatpush1.bf16.msra.mxu0 0
        %847 = vmatprep.subr.bf16.mxu0 0
        %848 = vmatpush1.bf16.msra.mxu0 0
        %849 = vmatprep.subr.bf16.mxu0 0
        %850 = vmatpush1.bf16.msra.mxu0 0
        %851 = vmatprep.subr.bf16.mxu0 0
        %852 = vmatpush1.bf16.msra.mxu0 0
        %853 = vmatprep.subr.bf16.mxu0 0
        %854 = vmatpush1.bf16.msra.mxu0 0
        %855 = vmatprep.subr.bf16.mxu0 0
        %856 = vmatpush1.bf16.msra.mxu0 0
        %857 = vmatprep.subr.bf16.mxu0 0
        %858 = vmatpush1.bf16.msra.mxu0 0
        %859 = vmatprep.subr.bf16.mxu0 0
        %860 = vmatpush1.bf16.msra.mxu0 0
        %861 = vmatprep.subr.bf16.mxu0 0
        %862 = vmatpush1.bf16.msra.mxu0 0
        %863 = vmatprep.subr.bf16.mxu0 0
        %864 = vmatpush1.bf16.msra.mxu0 0
        %865 = vmatprep.subr.bf16.mxu0 0
        %866 = vmatpush1.bf16.msra.mxu0 0
        %867 = vmatprep.subr.bf16.mxu0 0
        %868 = vmatpush1.bf16.msra.mxu0 0
        %869 = vmatprep.subr.bf16.mxu0 0
        %870 = vmatpush1.bf16.msra.mxu0 0
        %871 = vmatprep.mubr.bf16.mxu0 0
        %872 = vmatmul.mubr.bf16.gmra.mrb[0].mxu0 %v716
        %v873 = vpop.f32.mrb[0].mxu0
        %v874 = vadd.f32 0.0, %v873
        %v875 = vpop.f32.mrb[0].mxu0
        %v876 = vpop.f32.mrb[0].mxu0
        %v877 = vadd.f32 0.0, %v876
        %v878 = vpop.f32.mrb[0].mxu0
        %879 = vmatprep.mubr.bf16.mxu0 0
        %880 = vmatmul.mubr.bf16.gmra.mrb[0].mxu0 %v719
        %v881 = vpop.f32.mrb[0].mxu0
        %v882 = vadd.f32 0.0, %v881
        %v883 = vpop.f32.mrb[0].mxu0
        %v884 = vpop.f32.mrb[0].mxu0
        %v885 = vadd.f32 0.0, %v884
        %v886 = vpop.f32.mrb[0].mxu0
        %887 = vdwg.mxu0
        %888 = vmatprep.subr.bf16.mxu0 0
        %889 = vmatpush1.bf16.msra.mxu0 %v836
        %890 = vmatprep.subr.bf16.mxu0 0
        %891 = vmatpush1.bf16.msra.mxu0 %v837
        %892 = vmatprep.subr.bf16.mxu0 0
        %893 = vmatpush1.bf16.msra.mxu0 0
        %894 = vmatprep.subr.bf16.mxu0 0
        %895 = vmatpush1.bf16.msra.mxu0 0
        %896 = vmatprep.subr.bf16.mxu0 0
        %897 = vmatpush1.bf16.msra.mxu0 0
        %898 = vmatprep.subr.bf16.mxu0 0
        %899 = vmatpush1.bf16.msra.mxu0 0
        %900 = vmatprep.subr.bf16.mxu0 0
        %901 = vmatpush1.bf16.msra.mxu0 0
        %902 = vmatprep.subr.bf16.mxu0 0
        %903 = vmatpush1.bf16.msra.mxu0 0
        %904 = vmatprep.subr.bf16.mxu0 0
        %905 = vmatpush1.bf16.msra.mxu0 0
        %906 = vmatprep.subr.bf16.mxu0 0
        %907 = vmatpush1.bf16.msra.mxu0 0
        %908 = vmatprep.subr.bf16.mxu0 0
        %909 = vmatpush1.bf16.msra.mxu0 0
        %910 = vmatprep.subr.bf16.mxu0 0
        %911 = vmatpush1.bf16.msra.mxu0 0
        %912 = vmatprep.subr.bf16.mxu0 0
        %913 = vmatpush1.bf16.msra.mxu0 0
        %914 = vmatprep.subr.bf16.mxu0 0
        %915 = vmatpush1.bf16.msra.mxu0 0
        %916 = vmatprep.subr.bf16.mxu0 0
        %917 = vmatpush1.bf16.msra.mxu0 0
        %918 = vmatprep.subr.bf16.mxu0 0
        %919 = vmatpush1.bf16.msra.mxu0 0
        %920 = vmatprep.mubr.bf16.mxu0 0
        %921 = vmatmul.mubr.bf16.gmra.mrb[0].mxu0 %v782
        %v922 = vpop.f32.mrb[0].mxu0
        %v923 = vadd.f32 %v874, %v922
        %v924 = vpop.f32.mrb[0].mxu0
        %v925 = vpop.f32.mrb[0].mxu0
        %v926 = vadd.f32 %v877, %v925
        %v927 = vpop.f32.mrb[0].mxu0
        %928 = vmatprep.mubr.bf16.mxu0 0
        %929 = vmatmul.mubr.bf16.gmra.mrb[0].mxu0 %v785
        %v930 = vpop.f32.mrb[0].mxu0
        %v931 = vadd.f32 %v882, %v930
        %v932 = vpop.f32.mrb[0].mxu0
        %v933 = vpop.f32.mrb[0].mxu0
        %v934 = vadd.f32 %v885, %v933
        %v935 = vpop.f32.mrb[0].mxu0
        %936 = vdwg.mxu0
        %v937 = vmul.f32 %v689, %v689
        %v938 = vmul.f32 %v690, %v690
        %v939 = vmul.f32 %v691, %v691
        %v940 = vmul.f32 %v692, %v692
        %v941 = vmul.f32 %v693, %v693
        %v942 = vmul.f32 %v694, %v694
        %v943 = vpack.c.bf16 %v938, %v937
        %v944 = vpack.c.bf16 %v940, %v939
        %v945 = vpack.c.bf16 %v942, %v941
        %946 = vmatprep.subr.bf16.mxu0 0
        %947 = vmatpush1.bf16.msra.mxu0 %v945
        %948 = vmatprep.subr.bf16.mxu0 0
        %949 = vmatpush1.bf16.msra.mxu0 0
        %950 = vmatprep.subr.bf16.mxu0 0
        %951 = vmatpush1.bf16.msra.mxu0 0
        %952 = vmatprep.subr.bf16.mxu0 0
        %953 = vmatpush1.bf16.msra.mxu0 0
        %954 = vmatprep.subr.bf16.mxu0 0
        %955 = vmatpush1.bf16.msra.mxu0 0
        %956 = vmatprep.subr.bf16.mxu0 0
        %957 = vmatpush1.bf16.msra.mxu0 0
        %958 = vmatprep.subr.bf16.mxu0 0
        %959 = vmatpush1.bf16.msra.mxu0 0
        %960 = vmatprep.subr.bf16.mxu0 0
        %961 = vmatpush1.bf16.msra.mxu0 0
        %962 = vmatprep.subr.bf16.mxu0 0
        %963 = vmatpush1.bf16.msra.mxu0 0
        %964 = vmatprep.subr.bf16.mxu0 0
        %965 = vmatpush1.bf16.msra.mxu0 0
        %966 = vmatprep.subr.bf16.mxu0 0
        %967 = vmatpush1.bf16.msra.mxu0 0
        %968 = vmatprep.subr.bf16.mxu0 0
        %969 = vmatpush1.bf16.msra.mxu0 0
        %970 = vmatprep.subr.bf16.mxu0 0
        %971 = vmatpush1.bf16.msra.mxu0 0
        %972 = vmatprep.subr.bf16.mxu0 0
        %973 = vmatpush1.bf16.msra.mxu0 0
        %974 = vmatprep.subr.bf16.mxu0 0
        %975 = vmatpush1.bf16.msra.mxu0 0
        %976 = vmatprep.subr.bf16.mxu0 0
        %977 = vmatpush1.bf16.msra.mxu0 0
        %978 = vmatprep.mubr.bf16.mxu0 0
        %979 = vmatmul.mubr.bf16.gmra.mrb[0].mxu0 %v716
        %v980 = vpop.f32.mrb[0].mxu0
        %v981 = vadd.f32 0.0, %v980
        %v982 = vpop.f32.mrb[0].mxu0
        %v983 = vpop.f32.mrb[0].mxu0
        %v984 = vadd.f32 0.0, %v983
        %v985 = vpop.f32.mrb[0].mxu0
        %986 = vmatprep.mubr.bf16.mxu0 0
        %987 = vmatmul.mubr.bf16.gmra.mrb[0].mxu0 %v719
        %v988 = vpop.f32.mrb[0].mxu0
        %v989 = vadd.f32 0.0, %v988
        %v990 = vpop.f32.mrb[0].mxu0
        %v991 = vpop.f32.mrb[0].mxu0
        %v992 = vadd.f32 0.0, %v991
        %v993 = vpop.f32.mrb[0].mxu0
        %994 = vdwg.mxu0
        %995 = vmatprep.subr.bf16.mxu0 0
        %996 = vmatpush1.bf16.msra.mxu0 %v943
        %997 = vmatprep.subr.bf16.mxu0 0
        %998 = vmatpush1.bf16.msra.mxu0 %v944
        %999 = vmatprep.subr.bf16.mxu0 0
        %1000 = vmatpush1.bf16.msra.mxu0 0
        %1001 = vmatprep.subr.bf16.mxu0 0
        %1002 = vmatpush1.bf16.msra.mxu0 0
        %1003 = vmatprep.subr.bf16.mxu0 0
        %1004 = vmatpush1.bf16.msra.mxu0 0
        %1005 = vmatprep.subr.bf16.mxu0 0
        %1006 = vmatpush1.bf16.msra.mxu0 0
        %1007 = vmatprep.subr.bf16.mxu0 0
        %1008 = vmatpush1.bf16.msra.mxu0 0
        %1009 = vmatprep.subr.bf16.mxu0 0
        %1010 = vmatpush1.bf16.msra.mxu0 0
        %1011 = vmatprep.subr.bf16.mxu0 0
        %1012 = vmatpush1.bf16.msra.mxu0 0
        %1013 = vmatprep.subr.bf16.mxu0 0
        %1014 = vmatpush1.bf16.msra.mxu0 0
        %1015 = vmatprep.subr.bf16.mxu0 0
        %1016 = vmatpush1.bf16.msra.mxu0 0
        %1017 = vmatprep.subr.bf16.mxu0 0
        %1018 = vmatpush1.bf16.msra.mxu0 0
        %1019 = vmatprep.subr.bf16.mxu0 0
        %1020 = vmatpush1.bf16.msra.mxu0 0
        %1021 = vmatprep.subr.bf16.mxu0 0
        %1022 = vmatpush1.bf16.msra.mxu0 0
        %1023 = vmatprep.subr.bf16.mxu0 0
        %1024 = vmatpush1.bf16.msra.mxu0 0
        %1025 = vmatprep.subr.bf16.mxu0 0
        %1026 = vmatpush1.bf16.msra.mxu0 0
        %1027 = vmatprep.mubr.bf16.mxu0 0
        %1028 = vmatmul.mubr.bf16.gmra.mrb[0].mxu0 %v782
        %v1029 = vpop.f32.mrb[0].mxu0
        %v1030 = vadd.f32 %v981, %v1029
        %v1031 = vpop.f32.mrb[0].mxu0
        %v1032 = vpop.f32.mrb[0].mxu0
        %v1033 = vadd.f32 %v984, %v1032
        %v1034 = vpop.f32.mrb[0].mxu0
        %1035 = vmatprep.mubr.bf16.mxu0 0
        %1036 = vmatmul.mubr.bf16.gmra.mrb[0].mxu0 %v785
        %v1037 = vpop.f32.mrb[0].mxu0
        %v1038 = vadd.f32 %v989, %v1037
        %v1039 = vpop.f32.mrb[0].mxu0
        %v1040 = vpop.f32.mrb[0].mxu0
        %v1041 = vadd.f32 %v992, %v1040
        %v1042 = vpop.f32.mrb[0].mxu0
        %1043 = vdwg.mxu0
        %v1044 = vmul.f32 %v695, %v695
        %v1045 = vmul.f32 %v696, %v696
        %v1046 = vmul.f32 %v697, %v697
        %v1047 = vmul.f32 %v698, %v698
        %v1048 = vmul.f32 %v699, %v699
        %v1049 = vmul.f32 %v700, %v700
        %v1050 = vpack.c.bf16 %v1045, %v1044
        %v1051 = vpack.c.bf16 %v1047, %v1046
        %v1052 = vpack.c.bf16 %v1049, %v1048
        %1053 = vmatprep.subr.bf16.mxu0 0
        %1054 = vmatpush1.bf16.msra.mxu0 %v1052
        %1055 = vmatprep.subr.bf16.mxu0 0
        %1056 = vmatpush1.bf16.msra.mxu0 0
        %1057 = vmatprep.subr.bf16.mxu0 0
        %1058 = vmatpush1.bf16.msra.mxu0 0
        %1059 = vmatprep.subr.bf16.mxu0 0
        %1060 = vmatpush1.bf16.msra.mxu0 0
        %1061 = vmatprep.subr.bf16.mxu0 0
        %1062 = vmatpush1.bf16.msra.mxu0 0
        %1063 = vmatprep.subr.bf16.mxu0 0
        %1064 = vmatpush1.bf16.msra.mxu0 0
        %1065 = vmatprep.subr.bf16.mxu0 0
        %1066 = vmatpush1.bf16.msra.mxu0 0
        %1067 = vmatprep.subr.bf16.mxu0 0
        %1068 = vmatpush1.bf16.msra.mxu0 0
        %1069 = vmatprep.subr.bf16.mxu0 0
        %1070 = vmatpush1.bf16.msra.mxu0 0
        %1071 = vmatprep.subr.bf16.mxu0 0
        %1072 = vmatpush1.bf16.msra.mxu0 0
        %1073 = vmatprep.subr.bf16.mxu0 0
        %1074 = vmatpush1.bf16.msra.mxu0 0
        %1075 = vmatprep.subr.bf16.mxu0 0
        %1076 = vmatpush1.bf16.msra.mxu0 0
        %1077 = vmatprep.subr.bf16.mxu0 0
        %1078 = vmatpush1.bf16.msra.mxu0 0
        %1079 = vmatprep.subr.bf16.mxu0 0
        %1080 = vmatpush1.bf16.msra.mxu0 0
        %1081 = vmatprep.subr.bf16.mxu0 0
        %1082 = vmatpush1.bf16.msra.mxu0 0
        %1083 = vmatprep.subr.bf16.mxu0 0
        %1084 = vmatpush1.bf16.msra.mxu0 0
        %1085 = vmatprep.mubr.bf16.mxu0 0
        %1086 = vmatmul.mubr.bf16.gmra.mrb[0].mxu0 %v716
        %v1087 = vpop.f32.mrb[0].mxu0
        %v1088 = vadd.f32 0.0, %v1087
        %v1089 = vpop.f32.mrb[0].mxu0
        %v1090 = vpop.f32.mrb[0].mxu0
        %v1091 = vadd.f32 0.0, %v1090
        %v1092 = vpop.f32.mrb[0].mxu0
        %1093 = vmatprep.mubr.bf16.mxu0 0
        %1094 = vmatmul.mubr.bf16.gmra.mrb[0].mxu0 %v719
        %v1095 = vpop.f32.mrb[0].mxu0
        %v1096 = vadd.f32 0.0, %v1095
        %v1097 = vpop.f32.mrb[0].mxu0
        %v1098 = vpop.f32.mrb[0].mxu0
        %v1099 = vadd.f32 0.0, %v1098
        %v1100 = vpop.f32.mrb[0].mxu0
        %1101 = vdwg.mxu0
        %1102 = vmatprep.subr.bf16.mxu0 0
        %1103 = vmatpush1.bf16.msra.mxu0 %v1050
        %1104 = vmatprep.subr.bf16.mxu0 0
        %1105 = vmatpush1.bf16.msra.mxu0 %v1051
        %1106 = vmatprep.subr.bf16.mxu0 0
        %1107 = vmatpush1.bf16.msra.mxu0 0
        %1108 = vmatprep.subr.bf16.mxu0 0
        %1109 = vmatpush1.bf16.msra.mxu0 0
        %1110 = vmatprep.subr.bf16.mxu0 0
        %1111 = vmatpush1.bf16.msra.mxu0 0
        %1112 = vmatprep.subr.bf16.mxu0 0
        %1113 = vmatpush1.bf16.msra.mxu0 0
        %1114 = vmatprep.subr.bf16.mxu0 0
        %1115 = vmatpush1.bf16.msra.mxu0 0
        %1116 = vmatprep.subr.bf16.mxu0 0
        %1117 = vmatpush1.bf16.msra.mxu0 0
        %1118 = vmatprep.subr.bf16.mxu0 0
        %1119 = vmatpush1.bf16.msra.mxu0 0
        %1120 = vmatprep.subr.bf16.mxu0 0
        %1121 = vmatpush1.bf16.msra.mxu0 0
        %1122 = vmatprep.subr.bf16.mxu0 0
        %1123 = vmatpush1.bf16.msra.mxu0 0
        %1124 = vmatprep.subr.bf16.mxu0 0
        %1125 = vmatpush1.bf16.msra.mxu0 0
        %1126 = vmatprep.subr.bf16.mxu0 0
        %1127 = vmatpush1.bf16.msra.mxu0 0
        %1128 = vmatprep.subr.bf16.mxu0 0
        %1129 = vmatpush1.bf16.msra.mxu0 0
        %1130 = vmatprep.subr.bf16.mxu0 0
        %1131 = vmatpush1.bf16.msra.mxu0 0
        %1132 = vmatprep.subr.bf16.mxu0 0
        %1133 = vmatpush1.bf16.msra.mxu0 0
        %1134 = vmatprep.mubr.bf16.mxu0 0
        %1135 = vmatmul.mubr.bf16.gmra.mrb[0].mxu0 %v782
        %v1136 = vpop.f32.mrb[0].mxu0
        %v1137 = vadd.f32 %v1088, %v1136
        %v1138 = vpop.f32.mrb[0].mxu0
        %v1139 = vpop.f32.mrb[0].mxu0
        %v1140 = vadd.f32 %v1091, %v1139
        %v1141 = vpop.f32.mrb[0].mxu0
        %1142 = vmatprep.mubr.bf16.mxu0 0
        %1143 = vmatmul.mubr.bf16.gmra.mrb[0].mxu0 %v785
        %v1144 = vpop.f32.mrb[0].mxu0
        %v1145 = vadd.f32 %v1096, %v1144
        %v1146 = vpop.f32.mrb[0].mxu0
        %v1147 = vpop.f32.mrb[0].mxu0
        %v1148 = vadd.f32 %v1099, %v1147
        %v1149 = vpop.f32.mrb[0].mxu0
        %1150 = vdwg.mxu0
        %v1151 = vmul.f32 %v689, %v695
        %v1152 = vmul.f32 %v690, %v696
        %v1153 = vmul.f32 %v691, %v697
        %v1154 = vmul.f32 %v692, %v698
        %v1155 = vmul.f32 %v693, %v699
        %v1156 = vmul.f32 %v694, %v700
        %v1157 = vpack.c.bf16 %v1152, %v1151
        %v1158 = vpack.c.bf16 %v1154, %v1153
        %v1159 = vpack.c.bf16 %v1156, %v1155
        %1160 = vmatprep.subr.bf16.mxu0 0
        %1161 = vmatpush1.bf16.msra.mxu0 %v1159
        %1162 = vmatprep.subr.bf16.mxu0 0
        %1163 = vmatpush1.bf16.msra.mxu0 0
        %1164 = vmatprep.subr.bf16.mxu0 0
        %1165 = vmatpush1.bf16.msra.mxu0 0
        %1166 = vmatprep.subr.bf16.mxu0 0
        %1167 = vmatpush1.bf16.msra.mxu0 0
        %1168 = vmatprep.subr.bf16.mxu0 0
        %1169 = vmatpush1.bf16.msra.mxu0 0
        %1170 = vmatprep.subr.bf16.mxu0 0
        %1171 = vmatpush1.bf16.msra.mxu0 0
        %1172 = vmatprep.subr.bf16.mxu0 0
        %1173 = vmatpush1.bf16.msra.mxu0 0
        %1174 = vmatprep.subr.bf16.mxu0 0
        %1175 = vmatpush1.bf16.msra.mxu0 0
        %1176 = vmatprep.subr.bf16.mxu0 0
        %1177 = vmatpush1.bf16.msra.mxu0 0
        %1178 = vmatprep.subr.bf16.mxu0 0
        %1179 = vmatpush1.bf16.msra.mxu0 0
        %1180 = vmatprep.subr.bf16.mxu0 0
        %1181 = vmatpush1.bf16.msra.mxu0 0
        %1182 = vmatprep.subr.bf16.mxu0 0
        %1183 = vmatpush1.bf16.msra.mxu0 0
        %1184 = vmatprep.subr.bf16.mxu0 0
        %1185 = vmatpush1.bf16.msra.mxu0 0
        %1186 = vmatprep.subr.bf16.mxu0 0
        %1187 = vmatpush1.bf16.msra.mxu0 0
        %1188 = vmatprep.subr.bf16.mxu0 0
        %1189 = vmatpush1.bf16.msra.mxu0 0
        %1190 = vmatprep.subr.bf16.mxu0 0
        %1191 = vmatpush1.bf16.msra.mxu0 0
        %1192 = vmatprep.mubr.bf16.mxu0 0
        %1193 = vmatmul.mubr.bf16.gmra.mrb[0].mxu0 %v716
        %v1194 = vpop.f32.mrb[0].mxu0
        %v1195 = vadd.f32 0.0, %v1194
        %v1196 = vpop.f32.mrb[0].mxu0
        %v1197 = vpop.f32.mrb[0].mxu0
        %v1198 = vadd.f32 0.0, %v1197
        %v1199 = vpop.f32.mrb[0].mxu0
        %1200 = vmatprep.mubr.bf16.mxu0 0
        %1201 = vmatmul.mubr.bf16.gmra.mrb[0].mxu0 %v719
        %v1202 = vpop.f32.mrb[0].mxu0
        %v1203 = vadd.f32 0.0, %v1202
        %v1204 = vpop.f32.mrb[0].mxu0
        %v1205 = vpop.f32.mrb[0].mxu0
        %v1206 = vadd.f32 0.0, %v1205
        %v1207 = vpop.f32.mrb[0].mxu0
        %1208 = vdwg.mxu0
        %1209 = vmatprep.subr.bf16.mxu0 0
        %1210 = vmatpush1.bf16.msra.mxu0 %v1157
        %1211 = vmatprep.subr.bf16.mxu0 0
        %1212 = vmatpush1.bf16.msra.mxu0 %v1158
        %1213 = vmatprep.subr.bf16.mxu0 0
        %1214 = vmatpush1.bf16.msra.mxu0 0
        %1215 = vmatprep.subr.bf16.mxu0 0
        %1216 = vmatpush1.bf16.msra.mxu0 0
        %1217 = vmatprep.subr.bf16.mxu0 0
        %1218 = vmatpush1.bf16.msra.mxu0 0
        %1219 = vmatprep.subr.bf16.mxu0 0
        %1220 = vmatpush1.bf16.msra.mxu0 0
        %1221 = vmatprep.subr.bf16.mxu0 0
        %1222 = vmatpush1.bf16.msra.mxu0 0
        %1223 = vmatprep.subr.bf16.mxu0 0
        %1224 = vmatpush1.bf16.msra.mxu0 0
        %1225 = vmatprep.subr.bf16.mxu0 0
        %1226 = vmatpush1.bf16.msra.mxu0 0
        %1227 = vmatprep.subr.bf16.mxu0 0
        %1228 = vmatpush1.bf16.msra.mxu0 0
        %1229 = vmatprep.subr.bf16.mxu0 0
        %1230 = vmatpush1.bf16.msra.mxu0 0
        %1231 = vmatprep.subr.bf16.mxu0 0
        %1232 = vmatpush1.bf16.msra.mxu0 0
        %1233 = vmatprep.subr.bf16.mxu0 0
        %1234 = vmatpush1.bf16.msra.mxu0 0
        %1235 = vmatprep.subr.bf16.mxu0 0
        %1236 = vmatpush1.bf16.msra.mxu0 0
        %1237 = vmatprep.subr.bf16.mxu0 0
        %1238 = vmatpush1.bf16.msra.mxu0 0
        %1239 = vmatprep.subr.bf16.mxu0 0
        %1240 = vmatpush1.bf16.msra.mxu0 0
        %1241 = vmatprep.mubr.bf16.mxu0 0
        %1242 = vmatmul.mubr.bf16.gmra.mrb[0].mxu0 %v782
        %v1243 = vpop.f32.mrb[0].mxu0
        %v1244 = vadd.f32 %v1195, %v1243
        %v1245 = vpop.f32.mrb[0].mxu0
        %v1246 = vpop.f32.mrb[0].mxu0
        %v1247 = vadd.f32 %v1198, %v1246
        %v1248 = vpop.f32.mrb[0].mxu0
        %1249 = vmatprep.mubr.bf16.mxu0 0
        %1250 = vmatmul.mubr.bf16.gmra.mrb[0].mxu0 %v785
        %v1251 = vpop.f32.mrb[0].mxu0
        %v1252 = vadd.f32 %v1203, %v1251
        %v1253 = vpop.f32.mrb[0].mxu0
        %v1254 = vpop.f32.mrb[0].mxu0
        %v1255 = vadd.f32 %v1206, %v1254
        %v1256 = vpop.f32.mrb[0].mxu0
        %1257 = vdwg.mxu0
        %v1258 = vld [vmem:[#allocation2] sm:$0xf]
        %v1259 = vld [vmem:[#allocation2 + $0x4] sm:$0xf]
        %v1260 = vld [vmem:[#allocation2 + $0x8] sm:$0xf]
        %v1261 = vld [vmem:[#allocation2 + $0xc] sm:$0xf]
        %v1262 = vld [vmem:[#allocation2 + $0x10] sm:$0xf]
        %v1263 = vld [vmem:[#allocation2 + $0x14] sm:$0xf]
        %v1264 = vld [vmem:[#allocation2 + $0x18] sm:$0xf]
        %v1265 = vld [vmem:[#allocation2 + $0x1c] sm:$0xf]
        %v1266 = vld [vmem:[#allocation2 + $0x20] sm:$0xf]
        %v1267 = vld [vmem:[#allocation2 + $0x24] sm:$0xf]
        %v1268 = vld [vmem:[#allocation2 + $0x28] sm:$0xf]
        %v1269 = vld [vmem:[#allocation2 + $0x2c] sm:$0xf]
        %v1270 = vld [vmem:[#allocation2 + $0x30] sm:$0xf]
        %v1271 = vld [vmem:[#allocation2 + $0x34] sm:$0xf]
        %v1272 = vld [vmem:[#allocation2 + $0x38] sm:$0xf]
        %v1273 = vld [vmem:[#allocation2 + $0x3c] sm:$0xf]
        %v1274 = vpack.c.bf16 %v825, %v822
        %v1275 = vpack.c.bf16 %v833, %v830
        %v1292 = vunpack.c.l.b16 %v1258
        %v1293 = vunpack.c.l.b16 %v1259
        %v1294 = vunpack.c.l.b16 %v1260
        %v1295 = vunpack.c.l.b16 %v1261
        %v1296 = vunpack.c.l.b16 %v1262
        %v1297 = vunpack.c.l.b16 %v1263
        %v1298 = vunpack.c.l.b16 %v1264
        %v1299 = vunpack.c.l.b16 %v1265
        %v1300 = vunpack.c.l.b16 %v1266
        %v1301 = vunpack.c.l.b16 %v1267
        %v1302 = vunpack.c.l.b16 %v1268
        %v1303 = vunpack.c.l.b16 %v1269
        %v1304 = vunpack.c.l.b16 %v1270
        %v1305 = vunpack.c.l.b16 %v1271
        %v1306 = vunpack.c.l.b16 %v1272
        %v1307 = vunpack.c.l.b16 %v1273
        %v1308 = vpack.c.b16 %v1293, %v1292
        %v1309 = vpack.c.b16 %v1295, %v1294
        %v1310 = vpack.c.b16 %v1297, %v1296
        %v1311 = vpack.c.b16 %v1299, %v1298
        %v1312 = vpack.c.b16 %v1301, %v1300
        %v1313 = vpack.c.b16 %v1303, %v1302
        %v1314 = vpack.c.b16 %v1305, %v1304
        %v1315 = vpack.c.b16 %v1307, %v1306
        %1324 = vmatprep.subr.bf16.mxu0 0
        %1325 = vmatpush1.bf16.msra.mxu0 %v1308
        %1326 = vmatprep.subr.bf16.mxu0 0
        %1327 = vmatpush1.bf16.msra.mxu0 %v1309
        %1328 = vmatprep.subr.bf16.mxu0 0
        %1329 = vmatpush1.bf16.msra.mxu0 %v1310
        %1330 = vmatprep.subr.bf16.mxu0 0
        %1331 = vmatpush1.bf16.msra.mxu0 %v1311
        %1332 = vmatprep.subr.bf16.mxu0 0
        %1333 = vmatpush1.bf16.msra.mxu0 %v1312
        %1334 = vmatprep.subr.bf16.mxu0 0
        %1335 = vmatpush1.bf16.msra.mxu0 %v1313
        %1336 = vmatprep.subr.bf16.mxu0 0
        %1337 = vmatpush1.bf16.msra.mxu0 %v1314
        %1338 = vmatprep.subr.bf16.mxu0 0
        %1339 = vmatpush1.bf16.msra.mxu0 %v1315
        %1340 = vmatprep.subr.bf16.mxu0 0
        %1341 = vmatpush1.bf16.msra.mxu0 0
        %1342 = vmatprep.subr.bf16.mxu0 0
        %1343 = vmatpush1.bf16.msra.mxu0 0
        %1344 = vmatprep.subr.bf16.mxu0 0
        %1345 = vmatpush1.bf16.msra.mxu0 0
        %1346 = vmatprep.subr.bf16.mxu0 0
        %1347 = vmatpush1.bf16.msra.mxu0 0
        %1348 = vmatprep.subr.bf16.mxu0 0
        %1349 = vmatpush1.bf16.msra.mxu0 0
        %1350 = vmatprep.subr.bf16.mxu0 0
        %1351 = vmatpush1.bf16.msra.mxu0 0
        %1352 = vmatprep.subr.bf16.mxu0 0
        %1353 = vmatpush1.bf16.msra.mxu0 0
        %1354 = vmatprep.subr.bf16.mxu0 0
        %1355 = vmatpush1.bf16.msra.mxu0 0
        %1356 = vmatprep.mubr.bf16.mxu0 0
        %1357 = vmatmul.mubr.bf16.gmra.mrb[0].mxu0 %v1274
        %v1358 = vpop.f32.mrb[0].mxu0
        %v1359 = vadd.f32 0.0, %v1358
        %v1360 = vpop.f32.mrb[0].mxu0
        %v1361 = vpop.f32.mrb[0].mxu0
        %v1362 = vadd.f32 0.0, %v1361
        %v1363 = vpop.f32.mrb[0].mxu0
        %1364 = vmatprep.mubr.bf16.mxu0 0
        %1365 = vmatmul.mubr.bf16.gmra.mrb[0].mxu0 %v1275
        %v1366 = vpop.f32.mrb[0].mxu0
        %v1367 = vadd.f32 0.0, %v1366
        %v1368 = vpop.f32.mrb[0].mxu0
        %v1369 = vpop.f32.mrb[0].mxu0
        %v1370 = vadd.f32 0.0, %v1369
        %v1371 = vpop.f32.mrb[0].mxu0
        %1372 = vdwg.mxu0
        %v1373 = vpack.c.bf16 %v926, %v923
        %v1374 = vpack.c.bf16 %v934, %v931
        %1375 = vmatprep.subr.bf16.mxu0 0
        %1376 = vmatpush1.bf16.msra.mxu0 %v1308
        %1377 = vmatprep.subr.bf16.mxu0 0
        %1378 = vmatpush1.bf16.msra.mxu0 %v1309
        %1379 = vmatprep.subr.bf16.mxu0 0
        %1380 = vmatpush1.bf16.msra.mxu0 %v1310
        %1381 = vmatprep.subr.bf16.mxu0 0
        %1382 = vmatpush1.bf16.msra.mxu0 %v1311
        %1383 = vmatprep.subr.bf16.mxu0 0
        %1384 = vmatpush1.bf16.msra.mxu0 %v1312
        %1385 = vmatprep.subr.bf16.mxu0 0
        %1386 = vmatpush1.bf16.msra.mxu0 %v1313
        %1387 = vmatprep.subr.bf16.mxu0 0
        %1388 = vmatpush1.bf16.msra.mxu0 %v1314
        %1389 = vmatprep.subr.bf16.mxu0 0
        %1390 = vmatpush1.bf16.msra.mxu0 %v1315
        %1391 = vmatprep.subr.bf16.mxu0 0
        %1392 = vmatpush1.bf16.msra.mxu0 0
        %1393 = vmatprep.subr.bf16.mxu0 0
        %1394 = vmatpush1.bf16.msra.mxu0 0
        %1395 = vmatprep.subr.bf16.mxu0 0
        %1396 = vmatpush1.bf16.msra.mxu0 0
        %1397 = vmatprep.subr.bf16.mxu0 0
        %1398 = vmatpush1.bf16.msra.mxu0 0
        %1399 = vmatprep.subr.bf16.mxu0 0
        %1400 = vmatpush1.bf16.msra.mxu0 0
        %1401 = vmatprep.subr.bf16.mxu0 0
        %1402 = vmatpush1.bf16.msra.mxu0 0
        %1403 = vmatprep.subr.bf16.mxu0 0
        %1404 = vmatpush1.bf16.msra.mxu0 0
        %1405 = vmatprep.subr.bf16.mxu0 0
        %1406 = vmatpush1.bf16.msra.mxu0 0
        %1407 = vmatprep.mubr.bf16.mxu0 0
        %1408 = vmatmul.mubr.bf16.gmra.mrb[0].mxu0 %v1373
        %v1409 = vpop.f32.mrb[0].mxu0
        %v1410 = vadd.f32 0.0, %v1409
        %v1411 = vpop.f32.mrb[0].mxu0
        %v1412 = vpop.f32.mrb[0].mxu0
        %v1413 = vadd.f32 0.0, %v1412
        %v1414 = vpop.f32.mrb[0].mxu0
        %1415 = vmatprep.mubr.bf16.mxu0 0
        %1416 = vmatmul.mubr.bf16.gmra.mrb[0].mxu0 %v1374
        %v1417 = vpop.f32.mrb[0].mxu0
        %v1418 = vadd.f32 0.0, %v1417
        %v1419 = vpop.f32.mrb[0].mxu0
        %v1420 = vpop.f32.mrb[0].mxu0
        %v1421 = vadd.f32 0.0, %v1420
        %v1422 = vpop.f32.mrb[0].mxu0
        %1423 = vdwg.mxu0
        %v1424 = vpack.c.bf16 %v1033, %v1030
        %v1425 = vpack.c.bf16 %v1041, %v1038
        %1426 = vmatprep.subr.bf16.mxu0 0
        %1427 = vmatpush1.bf16.msra.mxu0 %v1308
        %1428 = vmatprep.subr.bf16.mxu0 0
        %1429 = vmatpush1.bf16.msra.mxu0 %v1309
        %1430 = vmatprep.subr.bf16.mxu0 0
        %1431 = vmatpush1.bf16.msra.mxu0 %v1310
        %1432 = vmatprep.subr.bf16.mxu0 0
        %1433 = vmatpush1.bf16.msra.mxu0 %v1311
        %1434 = vmatprep.subr.bf16.mxu0 0
        %1435 = vmatpush1.bf16.msra.mxu0 %v1312
        %1436 = vmatprep.subr.bf16.mxu0 0
        %1437 = vmatpush1.bf16.msra.mxu0 %v1313
        %1438 = vmatprep.subr.bf16.mxu0 0
        %1439 = vmatpush1.bf16.msra.mxu0 %v1314
        %1440 = vmatprep.subr.bf16.mxu0 0
        %1441 = vmatpush1.bf16.msra.mxu0 %v1315
        %1442 = vmatprep.subr.bf16.mxu0 0
        %1443 = vmatpush1.bf16.msra.mxu0 0
        %1444 = vmatprep.subr.bf16.mxu0 0
        %1445 = vmatpush1.bf16.msra.mxu0 0
        %1446 = vmatprep.subr.bf16.mxu0 0
        %1447 = vmatpush1.bf16.msra.mxu0 0
        %1448 = vmatprep.subr.bf16.mxu0 0
        %1449 = vmatpush1.bf16.msra.mxu0 0
        %1450 = vmatprep.subr.bf16.mxu0 0
        %1451 = vmatpush1.bf16.msra.mxu0 0
        %1452 = vmatprep.subr.bf16.mxu0 0
        %1453 = vmatpush1.bf16.msra.mxu0 0
        %1454 = vmatprep.subr.bf16.mxu0 0
        %1455 = vmatpush1.bf16.msra.mxu0 0
        %1456 = vmatprep.subr.bf16.mxu0 0
        %1457 = vmatpush1.bf16.msra.mxu0 0
        %1458 = vmatprep.mubr.bf16.mxu0 0
        %1459 = vmatmul.mubr.bf16.gmra.mrb[0].mxu0 %v1424
        %v1460 = vpop.f32.mrb[0].mxu0
        %v1461 = vadd.f32 0.0, %v1460
        %v1462 = vpop.f32.mrb[0].mxu0
        %v1463 = vpop.f32.mrb[0].mxu0
        %v1464 = vadd.f32 0.0, %v1463
        %v1465 = vpop.f32.mrb[0].mxu0
        %1466 = vmatprep.mubr.bf16.mxu0 0
        %1467 = vmatmul.mubr.bf16.gmra.mrb[0].mxu0 %v1425
        %v1468 = vpop.f32.mrb[0].mxu0
        %v1469 = vadd.f32 0.0, %v1468
        %v1470 = vpop.f32.mrb[0].mxu0
        %v1471 = vpop.f32.mrb[0].mxu0
        %v1472 = vadd.f32 0.0, %v1471
        %v1473 = vpop.f32.mrb[0].mxu0
        %1474 = vdwg.mxu0
        %v1475 = vpack.c.bf16 %v1140, %v1137
        %v1476 = vpack.c.bf16 %v1148, %v1145
        %1477 = vmatprep.subr.bf16.mxu0 0
        %1478 = vmatpush1.bf16.msra.mxu0 %v1308
        %1479 = vmatprep.subr.bf16.mxu0 0
        %1480 = vmatpush1.bf16.msra.mxu0 %v1309
        %1481 = vmatprep.subr.bf16.mxu0 0
        %1482 = vmatpush1.bf16.msra.mxu0 %v1310
        %1483 = vmatprep.subr.bf16.mxu0 0
        %1484 = vmatpush1.bf16.msra.mxu0 %v1311
        %1485 = vmatprep.subr.bf16.mxu0 0
        %1486 = vmatpush1.bf16.msra.mxu0 %v1312
        %1487 = vmatprep.subr.bf16.mxu0 0
        %1488 = vmatpush1.bf16.msra.mxu0 %v1313
        %1489 = vmatprep.subr.bf16.mxu0 0
        %1490 = vmatpush1.bf16.msra.mxu0 %v1314
        %1491 = vmatprep.subr.bf16.mxu0 0
        %1492 = vmatpush1.bf16.msra.mxu0 %v1315
        %1493 = vmatprep.subr.bf16.mxu0 0
        %1494 = vmatpush1.bf16.msra.mxu0 0
        %1495 = vmatprep.subr.bf16.mxu0 0
        %1496 = vmatpush1.bf16.msra.mxu0 0
        %1497 = vmatprep.subr.bf16.mxu0 0
        %1498 = vmatpush1.bf16.msra.mxu0 0
        %1499 = vmatprep.subr.bf16.mxu0 0
        %1500 = vmatpush1.bf16.msra.mxu0 0
        %1501 = vmatprep.subr.bf16.mxu0 0
        %1502 = vmatpush1.bf16.msra.mxu0 0
        %1503 = vmatprep.subr.bf16.mxu0 0
        %1504 = vmatpush1.bf16.msra.mxu0 0
        %1505 = vmatprep.subr.bf16.mxu0 0
        %1506 = vmatpush1.bf16.msra.mxu0 0
        %1507 = vmatprep.subr.bf16.mxu0 0
        %1508 = vmatpush1.bf16.msra.mxu0 0
        %1509 = vmatprep.mubr.bf16.mxu0 0
        %1510 = vmatmul.mubr.bf16.gmra.mrb[0].mxu0 %v1475
        %v1511 = vpop.f32.mrb[0].mxu0
        %v1512 = vadd.f32 0.0, %v1511
        %v1513 = vpop.f32.mrb[0].mxu0
        %v1514 = vpop.f32.mrb[0].mxu0
        %v1515 = vadd.f32 0.0, %v1514
        %v1516 = vpop.f32.mrb[0].mxu0
        %1517 = vmatprep.mubr.bf16.mxu0 0
        %1518 = vmatmul.mubr.bf16.gmra.mrb[0].mxu0 %v1476
        %v1519 = vpop.f32.mrb[0].mxu0
        %v1520 = vadd.f32 0.0, %v1519
        %v1521 = vpop.f32.mrb[0].mxu0
        %v1522 = vpop.f32.mrb[0].mxu0
        %v1523 = vadd.f32 0.0, %v1522
        %v1524 = vpop.f32.mrb[0].mxu0
        %1525 = vdwg.mxu0
        %v1526 = vpack.c.bf16 %v1247, %v1244
        %v1527 = vpack.c.bf16 %v1255, %v1252
        %1528 = vmatprep.subr.bf16.mxu0 0
        %1529 = vmatpush1.bf16.msra.mxu0 %v1308
        %1530 = vmatprep.subr.bf16.mxu0 0
        %1531 = vmatpush1.bf16.msra.mxu0 %v1309
        %1532 = vmatprep.subr.bf16.mxu0 0
        %1533 = vmatpush1.bf16.msra.mxu0 %v1310
        %1534 = vmatprep.subr.bf16.mxu0 0
        %1535 = vmatpush1.bf16.msra.mxu0 %v1311
        %1536 = vmatprep.subr.bf16.mxu0 0
        %1537 = vmatpush1.bf16.msra.mxu0 %v1312
        %1538 = vmatprep.subr.bf16.mxu0 0
        %1539 = vmatpush1.bf16.msra.mxu0 %v1313
        %1540 = vmatprep.subr.bf16.mxu0 0
        %1541 = vmatpush1.bf16.msra.mxu0 %v1314
        %1542 = vmatprep.subr.bf16.mxu0 0
        %1543 = vmatpush1.bf16.msra.mxu0 %v1315
        %1544 = vmatprep.subr.bf16.mxu0 0
        %1545 = vmatpush1.bf16.msra.mxu0 0
        %1546 = vmatprep.subr.bf16.mxu0 0
        %1547 = vmatpush1.bf16.msra.mxu0 0
        %1548 = vmatprep.subr.bf16.mxu0 0
        %1549 = vmatpush1.bf16.msra.mxu0 0
        %1550 = vmatprep.subr.bf16.mxu0 0
        %1551 = vmatpush1.bf16.msra.mxu0 0
        %1552 = vmatprep.subr.bf16.mxu0 0
        %1553 = vmatpush1.bf16.msra.mxu0 0
        %1554 = vmatprep.subr.bf16.mxu0 0
        %1555 = vmatpush1.bf16.msra.mxu0 0
        %1556 = vmatprep.subr.bf16.mxu0 0
        %1557 = vmatpush1.bf16.msra.mxu0 0
        %1558 = vmatprep.subr.bf16.mxu0 0
        %1559 = vmatpush1.bf16.msra.mxu0 0
        %1560 = vmatprep.mubr.bf16.mxu0 0
        %1561 = vmatmul.mubr.bf16.gmra.mrb[0].mxu0 %v1526
        %v1562 = vpop.f32.mrb[0].mxu0
        %v1563 = vadd.f32 0.0, %v1562
        %v1564 = vpop.f32.mrb[0].mxu0
        %v1565 = vpop.f32.mrb[0].mxu0
        %v1566 = vadd.f32 0.0, %v1565
        %v1567 = vpop.f32.mrb[0].mxu0
        %1568 = vmatprep.mubr.bf16.mxu0 0
        %1569 = vmatmul.mubr.bf16.gmra.mrb[0].mxu0 %v1527
        %v1570 = vpop.f32.mrb[0].mxu0
        %v1571 = vadd.f32 0.0, %v1570
        %v1572 = vpop.f32.mrb[0].mxu0
        %v1573 = vpop.f32.mrb[0].mxu0
        %v1574 = vadd.f32 0.0, %v1573
        %v1575 = vpop.f32.mrb[0].mxu0
        %1576 = vdwg.mxu0
        %v1577 = vmul.f32 %v1359, %v1410
        %v1578 = vmul.f32 %v1362, %v1413
        %v1579 = vmul.f32 %v1367, %v1418
        %v1580 = vmul.f32 %v1370, %v1421
        %v1581 = vmul.f32 %v1359, %v1359
        %v1582 = vmul.f32 %v1362, %v1362
        %v1583 = vmul.f32 %v1367, %v1367
        %v1584 = vmul.f32 %v1370, %v1370
        %v1585 = vmul.f32 %v1410, %v1410
        %v1586 = vmul.f32 %v1413, %v1413
        %v1587 = vmul.f32 %v1418, %v1418
        %v1588 = vmul.f32 %v1421, %v1421
        %v1589 = vmul.f32 %v1577, 2.0
        %v1590 = vmul.f32 %v1578, 2.0
        %v1591 = vmul.f32 %v1579, 2.0
        %v1592 = vmul.f32 %v1580, 2.0
        %v1593 = vadd.f32 %v1589, 0.0001
        %v1594 = vadd.f32 %v1590, 0.0001
        %v1595 = vadd.f32 %v1591, 0.0001
        %v1596 = vadd.f32 %v1592, 0.0001
        %v1597 = vsub.f32 %v1563, %v1577
        %v1598 = vsub.f32 %v1566, %v1578
        %v1599 = vsub.f32 %v1571, %v1579
        %v1600 = vsub.f32 %v1574, %v1580
        %v1601 = vmul.f32 %v1597, 2.0
        %v1602 = vmul.f32 %v1598, 2.0
        %v1603 = vmul.f32 %v1599, 2.0
        %v1604 = vmul.f32 %v1600, 2.0
        %v1605 = vadd.f32 %v1601, 0.0009
        %v1606 = vadd.f32 %v1602, 0.0009
        %v1607 = vadd.f32 %v1603, 0.0009
        %v1608 = vadd.f32 %v1604, 0.0009
        %v1609 = vmul.f32 %v1593, %v1605
        %v1610 = vmul.f32 %v1594, %v1606
        %v1611 = vmul.f32 %v1595, %v1607
        %v1612 = vmul.f32 %v1596, %v1608
        %v1613 = vadd.f32 %v1581, %v1585
        %v1614 = vadd.f32 %v1582, %v1586
        %v1615 = vadd.f32 %v1583, %v1587
        %v1616 = vadd.f32 %v1584, %v1588
        %v1617 = vadd.f32 %v1613, 0.0001
        %v1618 = vadd.f32 %v1614, 0.0001
        %v1619 = vadd.f32 %v1615, 0.0001
        %v1620 = vadd.f32 %v1616, 0.0001
        %v1621 = vsub.f32 %v1461, %v1581
        %v1622 = vsub.f32 %v1464, %v1582
        %v1623 = vsub.f32 %v1469, %v1583
        %v1624 = vsub.f32 %v1472, %v1584
        %v1625 = vsub.f32 %v1512, %v1585
        %v1626 = vsub.f32 %v1515, %v1586
        %v1627 = vsub.f32 %v1520, %v1587
        %v1628 = vsub.f32 %v1523, %v1588
        %v1629 = vadd.f32 %v1621, %v1625
        %v1630 = vadd.f32 %v1622, %v1626
        %v1631 = vadd.f32 %v1623, %v1627
        %v1632 = vadd.f32 %v1624, %v1628
        %v1633 = vadd.f32 %v1629, 0.0009
        %v1634 = vadd.f32 %v1630, 0.0009
        %v1635 = vadd.f32 %v1631, 0.0009
        %v1636 = vadd.f32 %v1632, 0.0009
        %v1637 = vmul.f32 %v1617, %v1633
        %v1638 = vmul.f32 %v1618, %v1634
        %v1639 = vmul.f32 %v1619, %v1635
        %v1640 = vmul.f32 %v1620, %v1636
        %v1641 = vrcp.pop %v1637
        %v1642 = vmul.f32 %v1609, %v1641
        %v1643 = vrcp.pop %v1638
        %v1644 = vmul.f32 %v1610, %v1643
        %v1645 = vrcp.pop %v1639
        %v1646 = vmul.f32 %v1611, %v1645
        %v1647 = vrcp.pop %v1640
        %v1648 = vmul.f32 %v1612, %v1647
        %v1649 = vadd.f32 %v1642, %v1644
        %v1650 = vadd.f32 %v1649, %v1646
        %v1651 = vadd.f32 %v1650, %v1648
        %1652 = vadd.xlane.f32.xlu0 %v1651
        %v1653 = vpop.xlane.xlu0 %1652
        %v1654 = vrot.slane %v1653, 4
        %v1655 = vadd.f32 %v1653, %v1654
        %v1656 = vrot.slane %v1655, 2
        %v1657 = vadd.f32 %v1655, %v1656
        %v1658 = vrot.slane %v1657, 1
        %v1659 = vadd.f32 %v1657, %v1658
        %s1660 = vtos %v1659
        %s1661 = sadd.f32 %s1660, 0.0
        %v1662 = vstv %s1661
        %1663 = vst [vmem:[%s640] sm:$0xff] %v1662
        %p1664 = scmp.lt.s32.totalorder %s41, 3
        // Predicated region
        $region77: #{tpu_custom_call.1} parent=51 // pred_check
          %p1665 = pneg %p1664
        $region78: #{tpu_custom_call.1} parent=51 // pred_check_branch
          %1667 = sbr.rel (%p1665) target = $region80
        $region79: #{tpu_custom_call.1} parent=51 // pred_region
          %v1668 = vld [vmem:[%s578] sm:$0xff]
          %v1669 = vld [vmem:[%s578 + $0x8] sm:$0xff]
          %v1670 = vld [vmem:[%s578 + $0x10] sm:$0xff]
          %v1671 = vld [vmem:[%s578 + $0x18] sm:$0xff]
          %v1672 = vsub.f32 %v1668, %v695
          %v1673 = vsub.f32 %v1669, %v696
          %v1674 = vsub.f32 %v1670, %v697
          %v1675 = vsub.f32 %v1671, %v698
          %v1676 = vand.u32 2147483647, %v1672
          %v1677 = vand.u32 2147483647, %v1673
          %v1678 = vand.u32 2147483647, %v1674
          %v1679 = vand.u32 2147483647, %v1675
          %v1680 = vadd.f32 %v1676, %v1677
          %v1681 = vadd.f32 %v1680, %v1678
          %v1682 = vadd.f32 %v1681, %v1679
          %1683 = vadd.xlane.f32.xlu0 %v1682
          %v1684 = vpop.xlane.xlu0 %1683
          %v1685 = vrot.slane %v1684, 4
          %v1686 = vadd.f32 %v1684, %v1685
          %v1687 = vrot.slane %v1686, 2
          %v1688 = vadd.f32 %v1686, %v1687
          %v1689 = vrot.slane %v1688, 1
          %v1690 = vadd.f32 %v1688, %v1689
          %s1691 = vtos %v1690
          %v1692 = vstv %s1691
          %1693 = vst [vmem:[%s647] sm:$0xff] %v1692
        $region80: #{tpu_custom_call.1} parent=51 // pred_fallthru
          _
        %p1694 = scmp.ge.s32.totalorder %s41, 3
        // Predicated region
        $region81: #{tpu_custom_call.1} parent=51 // pred_check
          %p1695 = pneg %p1694
        $region82: #{tpu_custom_call.1} parent=51 // pred_check_branch
          %1697 = sbr.rel (%p1695) target = $region84
        $region83: #{tpu_custom_call.1} parent=51 // pred_region
          %1698 = vst [vmem:[%s647] sm:$0xff] 0.0
        $region84: #{tpu_custom_call.1} parent=51 // pred_fallthru
          _
        %s1699 = sand.u32 %s306, 1
        %s1700 = scalar_lea.sflag [#allocation4], %s1699
        %s1701 = sand.u32 %s306, 1
        %s1702 = smul.addr %s1701, 8
        %s1703 = scalar_lea.vmem [#allocation13], %s1702
        %s1704 = sand.u32 %s334, 1
        %s1705 = scalar_lea.sflag [#allocation15], %s1704
        %s1706 = sand.u32 %s334, 1
        %s1707 = smul.addr %s1706, 8
        %s1708 = scalar_lea.vmem [#allocation14], %s1707
        // Predicated region
        $region85: #{tpu_custom_call.1} parent=51 // pred_check
          %p1709 = pneg %p316
        $region86: #{tpu_custom_call.1} parent=51 // pred_check_branch
          %1711 = sbr.rel (%p1709) target = $region88
        $region87: #{tpu_custom_call.1} parent=51 // pred_region
          %s1713 = ssub.s32 128, 128
          %1714 = vsyncadd %s1700, %s1713
          %s1715 = sadd.s32 %s42, %s41
          %s1716 = smul.addr %s1715, 128
          %s1717 = scalar_lea.hbm %s8, %s1716
          %s1719 = sshll.u32 %s1703, 4
          %s1720 = int_to_ptr.vmem [resolvable:$true] %s1719
          %1722 = dma.vmem_to_hbm [thread:$0]  %s1720, 128, %s1717, %s1700
        $region88: #{tpu_custom_call.1} parent=51 // pred_fallthru
          _
        // Predicated region
        $region89: #{tpu_custom_call.1} parent=51 // pred_check
          %p1723 = pneg %p344
        $region90: #{tpu_custom_call.1} parent=51 // pred_check_branch
          %1725 = sbr.rel (%p1723) target = $region92
        $region91: #{tpu_custom_call.1} parent=51 // pred_region
          %s1727 = ssub.s32 128, 128
          %1728 = vsyncadd %s1705, %s1727
          %s1729 = sadd.s32 %s42, %s41
          %s1730 = smul.addr %s1729, 128
          %s1731 = scalar_lea.hbm %s9, %s1730
          %s1733 = sshll.u32 %s1708, 4
          %s1734 = int_to_ptr.vmem [resolvable:$true] %s1733
          %1736 = dma.vmem_to_hbm [thread:$0]  %s1734, 128, %s1731, %s1705
        $region92: #{tpu_custom_call.1} parent=51 // pred_fallthru
          _
      $region52: #{tpu_custom_call.1} parent=5 // pred_fallthru
        _
      %p1737 = scmp.le.s32.totalorder 2, %s32
      // Predicated region
      $region93: #{tpu_custom_call.1} parent=5 // pred_check
        %p1738 = pneg %p1737
      $region94: #{tpu_custom_call.1} parent=5 // pred_check_branch
        %1740 = sbr.rel (%p1738) target = $region96
      $region95: #{tpu_custom_call.1} parent=5 // pred_region
        %s1741 = ssub.s32 %s32, 2
        // Predicated region
        $region97: #{tpu_custom_call.1} parent=95 // pred_check
          %p1742 = pneg %p322
        $region98: #{tpu_custom_call.1} parent=95 // pred_check_branch
          %1744 = sbr.rel (%p1742) target = $region100
        $region99: #{tpu_custom_call.1} parent=95 // pred_region
          %s1745 = sand.u32 %s307, 1
          %s1746 = scalar_lea.sflag [#allocation4], %s1745
          %s1747 = sand.u32 %s307, 1
          %s1748 = smul.addr %s1747, 8
          %s1749 = scalar_lea.vmem [#allocation13], %s1748
          %1750 = dma.done %s1746, 128
        $region100: #{tpu_custom_call.1} parent=95 // pred_fallthru
          _
        // Predicated region
        $region101: #{tpu_custom_call.1} parent=95 // pred_check
          %p1751 = pneg %p350
        $region102: #{tpu_custom_call.1} parent=95 // pred_check_branch
          %1753 = sbr.rel (%p1751) target = $region104
        $region103: #{tpu_custom_call.1} parent=95 // pred_region
          %s1754 = sand.u32 %s335, 1
          %s1755 = scalar_lea.sflag [#allocation15], %s1754
          %s1756 = sand.u32 %s335, 1
          %s1757 = smul.addr %s1756, 8
          %s1758 = scalar_lea.vmem [#allocation14], %s1757
          %1759 = dma.done %s1755, 128
        $region104: #{tpu_custom_call.1} parent=95 // pred_fallthru
          _
      $region96: #{tpu_custom_call.1} parent=5 // pred_fallthru
        _
    $region6: #{tpu_custom_call.1} parent=1 // loop_footer
      %s36 = sadd.s32 1, %s32
    $region7: #{tpu_custom_call.1} parent=1 // loop_footer_branch
      %31 = sbr.rel target = $region3
    $region8: #{tpu_custom_call.1} parent=1 // loop_exit
      _
    %1760 = vsyncpa [#allocation3], 1
    %s1761 = scalar_lea.sflag [#allocation3], 1
    %1762 = vsyncpa %s1761, 1
    %1763 = vsyncpa [#allocation6], 1
    %s1764 = scalar_lea.sflag [#allocation6], 1
    %1765 = vsyncpa %s1764, 1
    %1766 = vsyncpa [#allocation9], 1
    %s1767 = scalar_lea.sflag [#allocation9], 1
    %1768 = vsyncpa %s1767, 1
    %1769 = vsyncpa [#allocation12], 1
    %s1770 = scalar_lea.sflag [#allocation12], 1
    %1771 = vsyncpa %s1770, 1
    %1772 = vsyncpa [#allocation4], 1
    %s1773 = scalar_lea.sflag [#allocation4], 1
    %1774 = vsyncpa %s1773, 1
    %1775 = vsyncpa [#allocation15], 1
    %s1776 = scalar_lea.sflag [#allocation15], 1
    %1777 = vsyncpa %s1776, 1

</llo_original>
